<compile_context>
chip_gen: v7x
topology: tpu7x:2x2x1
jax: 0.10.0
libtpu: 0.0.40
codegen_flags: <defaults>
</compile_context>

<pallas_src>
import functools
import math

import jax
import jax.numpy as jnp
import numpy as np
from jax.experimental import pallas as pl
from jax.experimental.pallas import tpu as pltpu


def mha_kernel(x_ref, wq_ref, wk_ref, wv_ref, bq_ref, bk_ref, bv_ref,
               wo_ref, bo_ref, out_ref, attnw_ref, *, matmul_dtype):
    """One batch element of multi-head self-attention (all heads batched).

    x_ref:     (1, S, D)   input rows for this batch element
    wq/wk/wv:  (H, D, hd)  per-head input-projection weights (pre-transposed)
    bq/bk/bv:  (H, 1, hd)  per-head input-projection biases
    wo_ref:    (H, hd, D)  per-head output-projection weights (pre-transposed)
    bo_ref:    (1, D)      output-projection bias
    out_ref:   (1, S, D)   attention output
    attnw_ref: (1, S, S)   head-averaged attention probabilities
    """
    _, S, D = x_ref.shape
    H, _, hd = wq_ref.shape
    scale = 1.0 / math.sqrt(hd)
    f32 = jnp.float32
    cast = lambda t: t.astype(matmul_dtype)

    x = x_ref[0]                                         # (S, D)
    xh = cast(jnp.broadcast_to(x, (H, S, D)))            # (H, S, D), hoisted once

    # Head-batched QKV projections (one batched dot_general each).
    q = jnp.einsum('hsd,hde->hse', xh, cast(wq_ref[...]),
                   preferred_element_type=f32) + bq_ref[...]
    k = jnp.einsum('hsd,hde->hse', xh, cast(wk_ref[...]),
                   preferred_element_type=f32) + bk_ref[...]
    v = jnp.einsum('hsd,hde->hse', xh, cast(wv_ref[...]),
                   preferred_element_type=f32) + bv_ref[...]
    q = q * scale

    # Scores + softmax (f32), batched over heads.
    sc = jnp.einsum('hqd,hkd->hqk', cast(q), cast(k),
                    preferred_element_type=f32)          # (H, S, S)
    m = jnp.max(sc, axis=-1, keepdims=True)
    e = jnp.exp(sc - m)
    denom = jnp.sum(e, axis=-1, keepdims=True)
    p = e * pl.reciprocal(denom, approx=True)            # divide -> EUP reciprocal

    # P @ V, then per-head output projection; head-merge folded into a sum over H.
    ctx = jnp.einsum('hqk,hkd->hqd', cast(p), cast(v),
                     preferred_element_type=f32)         # (H, S, hd)
    out_h = jnp.einsum('hqd,hdo->hqo', cast(ctx), cast(wo_ref[...]),
                       preferred_element_type=f32)       # (H, S, D)
    out = jnp.sum(out_h, axis=0) + bo_ref[...]           # (S, D)

    out_ref[0] = out.astype(out_ref.dtype)
    attnw_ref[0] = (jnp.sum(p, axis=0) * (1.0 / H)).astype(attnw_ref.dtype)


def custom_transformer_encoder_layer(src, params, *, nhead,
                                     matmul_dtype=jnp.float32):
    """Pallas-backed forward of CustomTransformerEncoderLayer (self-attention)."""
    S, B, D = src.shape
    assert D % nhead == 0, "d_model must be divisible by nhead"
    hd = D // nhead
    w_in, b_in = params["w_in"], params["b_in"]          # (3D, D), (1, 3D)
    w_out, b_out = params["w_out"], params["b_out"]      # (D, D),  (1, D)

    # ---- free, wrapper-side layout plumbing (no in-kernel transposes) ----
    def w_heads(w):  # (D, D) torch (out, in) -> (H, D_in, hd)
        return w.reshape(nhead, hd, D).transpose(0, 2, 1)

    wq = w_heads(w_in[0 * D:1 * D])
    wk = w_heads(w_in[1 * D:2 * D])
    wv = w_heads(w_in[2 * D:3 * D])
    bq = b_in[0, 0 * D:1 * D].reshape(nhead, 1, hd)
    bk = b_in[0, 1 * D:2 * D].reshape(nhead, 1, hd)
    bv = b_in[0, 2 * D:3 * D].reshape(nhead, 1, hd)
    wo = w_out.reshape(D, nhead, hd).transpose(1, 2, 0)  # (H, hd, D)

    x_bsd = jnp.transpose(src, (1, 0, 2))                # (B, S, D)

    kernel = functools.partial(mha_kernel, matmul_dtype=matmul_dtype)
    full3 = lambda shape: pl.BlockSpec(shape, lambda b: (0, 0, 0))

    out_bsd, attnw = pl.pallas_call(
        kernel,
        grid=(B,),
        in_specs=[
            pl.BlockSpec((1, S, D), lambda b: (b, 0, 0)),     # x
            full3((nhead, D, hd)),                            # wq
            full3((nhead, D, hd)),                            # wk
            full3((nhead, D, hd)),                            # wv
            full3((nhead, 1, hd)),                            # bq
            full3((nhead, 1, hd)),                            # bk
            full3((nhead, 1, hd)),                            # bv
            full3((nhead, hd, D)),                            # wo
            pl.BlockSpec((1, D), lambda b: (0, 0)),           # b_out
        ],
        out_specs=(pl.BlockSpec((1, S, D), lambda b: (b, 0, 0)),
                   pl.BlockSpec((1, S, S), lambda b: (b, 0, 0))),
        out_shape=(jax.ShapeDtypeStruct((B, S, D), src.dtype),
                   jax.ShapeDtypeStruct((B, S, S), src.dtype)),
        compiler_params=pltpu.CompilerParams(
            dimension_semantics=("parallel",)),               # megacore on v7x
    )(x_bsd, wq, wk, wv, bq, bk, bv, wo, b_out)

    return jnp.transpose(out_bsd, (1, 0, 2)), attnw


def ref_mha(src, params, *, nhead):
    """Pure-JAX reference (mirrors torch.nn.MultiheadAttention forward, eval)."""
    S, B, D = src.shape
    hd = D // nhead
    w_in, b_in = params["w_in"], params["b_in"]
    w_out, b_out = params["w_out"], params["b_out"]

    qkv = jnp.einsum("sbd,ed->sbe", src, w_in) + b_in[0]
    q, k, v = qkv[..., :D], qkv[..., D:2 * D], qkv[..., 2 * D:]

    def split(t):  # (S,B,D) -> (B,H,S,hd)
        return t.reshape(S, B, nhead, hd).transpose(1, 2, 0, 3)

    qh = split(q) / jnp.sqrt(jnp.float32(hd))
    kh = split(k)
    vh = split(v)
    sc = jnp.einsum("bhqd,bhkd->bhqk", qh, kh)
    p = jax.nn.softmax(sc, axis=-1)
    ctx = jnp.einsum("bhqk,bhkd->bhqd", p, vh)            # (B,H,S,hd)
    ctx = ctx.transpose(2, 0, 1, 3).reshape(S, B, D)      # (S,B,D)
    out = jnp.einsum("sbd,ed->sbe", ctx, w_out) + b_out[0]
    return out, p.mean(axis=1)


if __name__ == "__main__":
    # Small shapes consistent with the module: seq=8, batch=2, d_model=32, nhead=4.
    S, B, D, NHEAD = 8, 2, 32, 4

    key = jax.random.PRNGKey(0)
    k_src, k_win, k_bin, k_wout, k_bout = jax.random.split(key, 5)

    src = jax.random.normal(k_src, (S, B, D), dtype=jnp.float32)
    params = {
        "w_in":  0.05 * jax.random.normal(k_win,  (3 * D, D), dtype=jnp.float32),
        "b_in":  0.01 * jax.random.normal(k_bin,  (1, 3 * D), dtype=jnp.float32),
        "w_out": 0.05 * jax.random.normal(k_wout, (D, D),     dtype=jnp.float32),
        "b_out": 0.01 * jax.random.normal(k_bout, (1, D),     dtype=jnp.float32),
    }

    attn_out, attn_w = custom_transformer_encoder_layer(src, params, nhead=NHEAD)
    attn_out, attn_w = jax.block_until_ready((attn_out, attn_w))

    ref_out, ref_w = ref_mha(src, params, nhead=NHEAD)
    # Tolerance loosened slightly vs exact f32 because the softmax denominator
    # uses the EUP approximate reciprocal (pl.reciprocal(approx=True)).
    np.testing.assert_allclose(np.asarray(attn_out), np.asarray(ref_out),
                               rtol=5e-3, atol=1e-3)
    np.testing.assert_allclose(np.asarray(attn_w), np.asarray(ref_w),
                               rtol=5e-3, atol=1e-3)

    print("KERNEL_OK")
</pallas_src>

<mosaic_0001>
module attributes {stable_mosaic.version = 11 : i64} {
  func.func @mha_kernel(%arg0: i32, %arg1: memref<1x8x32xf32, #tpu.memory_space<vmem>>, %arg2: memref<4x32x8xf32, #tpu.memory_space<vmem>>, %arg3: memref<4x32x8xf32, #tpu.memory_space<vmem>>, %arg4: memref<4x32x8xf32, #tpu.memory_space<vmem>>, %arg5: memref<4x1x8xf32, #tpu.memory_space<vmem>>, %arg6: memref<4x1x8xf32, #tpu.memory_space<vmem>>, %arg7: memref<4x1x8xf32, #tpu.memory_space<vmem>>, %arg8: memref<4x8x32xf32, #tpu.memory_space<vmem>>, %arg9: memref<1x32xf32, #tpu.memory_space<vmem>>, %arg10: memref<1x8x32xf32, #tpu.memory_space<vmem>>, %arg11: memref<1x8x8xf32, #tpu.memory_space<vmem>>) attributes {dimension_semantics = [#tpu.dimension_semantics<parallel>], iteration_bounds = array<i64: 2>, scalar_prefetch = 0 : i64, scratch_operands = 0 : i64, tpu.core_type = #tpu.core_type<tc>, window_params = [{transform_indices = @transform_0, window_bounds = array<i64: 1, 8, 32>}, {pipeline_mode = #tpu.pipeline_mode<synchronous>, transform_indices = @transform_1, window_bounds = array<i64: 4, 32, 8>}, {pipeline_mode = #tpu.pipeline_mode<synchronous>, transform_indices = @transform_2, window_bounds = array<i64: 4, 32, 8>}, {pipeline_mode = #tpu.pipeline_mode<synchronous>, transform_indices = @transform_3, window_bounds = array<i64: 4, 32, 8>}, {pipeline_mode = #tpu.pipeline_mode<synchronous>, transform_indices = @transform_4, window_bounds = array<i64: 4, 1, 8>}, {pipeline_mode = #tpu.pipeline_mode<synchronous>, transform_indices = @transform_5, window_bounds = array<i64: 4, 1, 8>}, {pipeline_mode = #tpu.pipeline_mode<synchronous>, transform_indices = @transform_6, window_bounds = array<i64: 4, 1, 8>}, {pipeline_mode = #tpu.pipeline_mode<synchronous>, transform_indices = @transform_7, window_bounds = array<i64: 4, 8, 32>}, {pipeline_mode = #tpu.pipeline_mode<synchronous>, transform_indices = @transform_8, window_bounds = array<i64: 1, 32>}, {transform_indices = @transform_9, window_bounds = array<i64: 1, 8, 32>}, {transform_indices = @transform_10, window_bounds = array<i64: 1, 8, 8>}]} {
    %c0 = arith.constant 0 : index
    %c0_0 = arith.constant 0 : index
    %c0_1 = arith.constant 0 : index
    %0 = vector.load %arg1[%c0, %c0_0, %c0_1] : memref<1x8x32xf32, #tpu.memory_space<vmem>>, vector<1x8x32xf32>
    %1 = vector.shape_cast %0 : vector<1x8x32xf32> to vector<8x32xf32>
    %2 = vector.shape_cast %1 : vector<8x32xf32> to vector<1x8x32xf32>
    %3 = vector.broadcast %2 : vector<1x8x32xf32> to vector<4x8x32xf32>
    %c0_2 = arith.constant 0 : index
    %c0_3 = arith.constant 0 : index
    %c0_4 = arith.constant 0 : index
    %4 = vector.load %arg2[%c0_2, %c0_3, %c0_4] : memref<4x32x8xf32, #tpu.memory_space<vmem>>, vector<4x32x8xf32>
    "tpu.trace_start"() <{level = 10 : i32, message = "hsd,hde->hse"}> : () -> ()
    %cst = arith.constant dense<0.000000e+00> : vector<4x8x8xf32>
    %5 = tpu.matmul %3, %4, %cst {dimension_numbers = #tpu.dot_dimension_numbers<[2], [1], [1], [2], [0, 0, 0, 1, 1, 2], [0], [0]>} : vector<4x8x32xf32>, vector<4x32x8xf32>, vector<4x8x8xf32> -> vector<4x8x8xf32>
    "tpu.trace_stop"() : () -> ()
    %c0_5 = arith.constant 0 : index
    %c0_6 = arith.constant 0 : index
    %c0_7 = arith.constant 0 : index
    %6 = vector.load %arg5[%c0_5, %c0_6, %c0_7] : memref<4x1x8xf32, #tpu.memory_space<vmem>>, vector<4x1x8xf32>
    %7 = vector.broadcast %6 : vector<4x1x8xf32> to vector<4x8x8xf32>
    %8 = arith.addf %5, %7 : vector<4x8x8xf32>
    %c0_8 = arith.constant 0 : index
    %c0_9 = arith.constant 0 : index
    %c0_10 = arith.constant 0 : index
    %9 = vector.load %arg3[%c0_8, %c0_9, %c0_10] : memref<4x32x8xf32, #tpu.memory_space<vmem>>, vector<4x32x8xf32>
    "tpu.trace_start"() <{level = 10 : i32, message = "hsd,hde->hse"}> : () -> ()
    %cst_11 = arith.constant dense<0.000000e+00> : vector<4x8x8xf32>
    %10 = tpu.matmul %3, %9, %cst_11 {dimension_numbers = #tpu.dot_dimension_numbers<[2], [1], [1], [2], [0, 0, 0, 1, 1, 2], [0], [0]>} : vector<4x8x32xf32>, vector<4x32x8xf32>, vector<4x8x8xf32> -> vector<4x8x8xf32>
    "tpu.trace_stop"() : () -> ()
    %c0_12 = arith.constant 0 : index
    %c0_13 = arith.constant 0 : index
    %c0_14 = arith.constant 0 : index
    %11 = vector.load %arg6[%c0_12, %c0_13, %c0_14] : memref<4x1x8xf32, #tpu.memory_space<vmem>>, vector<4x1x8xf32>
    %12 = vector.broadcast %11 : vector<4x1x8xf32> to vector<4x8x8xf32>
    %13 = arith.addf %10, %12 : vector<4x8x8xf32>
    %c0_15 = arith.constant 0 : index
    %c0_16 = arith.constant 0 : index
    %c0_17 = arith.constant 0 : index
    %14 = vector.load %arg4[%c0_15, %c0_16, %c0_17] : memref<4x32x8xf32, #tpu.memory_space<vmem>>, vector<4x32x8xf32>
    "tpu.trace_start"() <{level = 10 : i32, message = "hsd,hde->hse"}> : () -> ()
    %cst_18 = arith.constant dense<0.000000e+00> : vector<4x8x8xf32>
    %15 = tpu.matmul %3, %14, %cst_18 {dimension_numbers = #tpu.dot_dimension_numbers<[2], [1], [1], [2], [0, 0, 0, 1, 1, 2], [0], [0]>} : vector<4x8x32xf32>, vector<4x32x8xf32>, vector<4x8x8xf32> -> vector<4x8x8xf32>
    "tpu.trace_stop"() : () -> ()
    %c0_19 = arith.constant 0 : index
    %c0_20 = arith.constant 0 : index
    %c0_21 = arith.constant 0 : index
    %16 = vector.load %arg7[%c0_19, %c0_20, %c0_21] : memref<4x1x8xf32, #tpu.memory_space<vmem>>, vector<4x1x8xf32>
    %17 = vector.broadcast %16 : vector<4x1x8xf32> to vector<4x8x8xf32>
    %18 = arith.addf %15, %17 : vector<4x8x8xf32>
    %cst_22 = arith.constant 0.353553385 : f32
    %19 = vector.broadcast %cst_22 : f32 to vector<4x8x8xf32>
    %20 = arith.mulf %8, %19 : vector<4x8x8xf32>
    "tpu.trace_start"() <{level = 10 : i32, message = "hqd,hkd->hqk"}> : () -> ()
    %cst_23 = arith.constant dense<0.000000e+00> : vector<4x8x8xf32>
    %21 = tpu.matmul %20, %13, %cst_23 {dimension_numbers = #tpu.dot_dimension_numbers<[2], [2], [1], [1], [0, 0, 0, 1, 1, 1], [0], [0]>} : vector<4x8x8xf32>, vector<4x8x8xf32>, vector<4x8x8xf32> -> vector<4x8x8xf32>
    "tpu.trace_stop"() : () -> ()
    %cst_24 = arith.constant dense<0xFF800000> : vector<4x8xf32>
    %22 = vector.multi_reduction <maximumf>, %21, %cst_24 [2] : vector<4x8x8xf32> to vector<4x8xf32>
    %23 = vector.shape_cast %22 : vector<4x8xf32> to vector<4x8x1xf32>
    %24 = vector.broadcast %23 : vector<4x8x1xf32> to vector<4x8x8xf32>
    %25 = arith.subf %21, %24 : vector<4x8x8xf32>
    %26 = math.exp %25 : vector<4x8x8xf32>
    %cst_25 = arith.constant dense<0.000000e+00> : vector<4x8xf32>
    %27 = vector.multi_reduction <add>, %26, %cst_25 [2] : vector<4x8x8xf32> to vector<4x8xf32>
    %28 = vector.shape_cast %27 : vector<4x8xf32> to vector<4x8x1xf32>
    %29 = tpu.reciprocal %28 {approx = true} : vector<4x8x1xf32> -> vector<4x8x1xf32>
    %30 = vector.broadcast %29 : vector<4x8x1xf32> to vector<4x8x8xf32>
    %31 = arith.mulf %26, %30 : vector<4x8x8xf32>
    "tpu.trace_start"() <{level = 10 : i32, message = "hqk,hkd->hqd"}> : () -> ()
    %cst_26 = arith.constant dense<0.000000e+00> : vector<4x8x8xf32>
    %32 = tpu.matmul %31, %18, %cst_26 {dimension_numbers = #tpu.dot_dimension_numbers<[2], [1], [1], [2], [0, 0, 0, 1, 1, 2], [0], [0]>} : vector<4x8x8xf32>, vector<4x8x8xf32>, vector<4x8x8xf32> -> vector<4x8x8xf32>
    "tpu.trace_stop"() : () -> ()
    %c0_27 = arith.constant 0 : index
    %c0_28 = arith.constant 0 : index
    %c0_29 = arith.constant 0 : index
    %33 = vector.load %arg8[%c0_27, %c0_28, %c0_29] : memref<4x8x32xf32, #tpu.memory_space<vmem>>, vector<4x8x32xf32>
    "tpu.trace_start"() <{level = 10 : i32, message = "hqd,hdo->hqo"}> : () -> ()
    %cst_30 = arith.constant dense<0.000000e+00> : vector<4x8x32xf32>
    %34 = tpu.matmul %32, %33, %cst_30 {dimension_numbers = #tpu.dot_dimension_numbers<[2], [1], [1], [2], [0, 0, 0, 1, 1, 2], [0], [0]>} : vector<4x8x8xf32>, vector<4x8x32xf32>, vector<4x8x32xf32> -> vector<4x8x32xf32>
    "tpu.trace_stop"() : () -> ()
    %cst_31 = arith.constant dense<0.000000e+00> : vector<8x32xf32>
    %35 = vector.multi_reduction <add>, %34, %cst_31 [0] : vector<4x8x32xf32> to vector<8x32xf32>
    %c0_32 = arith.constant 0 : index
    %c0_33 = arith.constant 0 : index
    %36 = vector.load %arg9[%c0_32, %c0_33] : memref<1x32xf32, #tpu.memory_space<vmem>>, vector<1x32xf32>
    %37 = vector.broadcast %36 : vector<1x32xf32> to vector<8x32xf32>
    %38 = arith.addf %35, %37 : vector<8x32xf32>
    %c0_34 = arith.constant 0 : index
    %c0_35 = arith.constant 0 : index
    %c0_36 = arith.constant 0 : index
    %39 = vector.load %arg10[%c0_34, %c0_35, %c0_36] : memref<1x8x32xf32, #tpu.memory_space<vmem>>, vector<1x8x32xf32>
    %40 = vector.shape_cast %39 : vector<1x8x32xf32> to vector<8x32xf32>
    %41 = vector.shape_cast %38 : vector<8x32xf32> to vector<1x8x32xf32>
    tpu.vector_store %arg10[%c0_34, %c0_35, %c0_36], %41 {strides = array<i32>} : memref<1x8x32xf32, #tpu.memory_space<vmem>>, vector<1x8x32xf32>,
    %cst_37 = arith.constant dense<0.000000e+00> : vector<8x8xf32>
    %42 = vector.multi_reduction <add>, %31, %cst_37 [0] : vector<4x8x8xf32> to vector<8x8xf32>
    %cst_38 = arith.constant 2.500000e-01 : f32
    %43 = vector.broadcast %cst_38 : f32 to vector<8x8xf32>
    %44 = arith.mulf %42, %43 : vector<8x8xf32>
    %c0_39 = arith.constant 0 : index
    %c0_40 = arith.constant 0 : index
    %c0_41 = arith.constant 0 : index
    %45 = vector.load %arg11[%c0_39, %c0_40, %c0_41] : memref<1x8x8xf32, #tpu.memory_space<vmem>>, vector<1x8x8xf32>
    %46 = vector.shape_cast %45 : vector<1x8x8xf32> to vector<8x8xf32>
    %47 = vector.shape_cast %44 : vector<8x8xf32> to vector<1x8x8xf32>
    tpu.vector_store %arg11[%c0_39, %c0_40, %c0_41], %47 {strides = array<i32>} : memref<1x8x8xf32, #tpu.memory_space<vmem>>, vector<1x8x8xf32>,
    return
  }
  func.func @transform_0(%arg0: i32) -> (i32, i32, i32) {
    %c0_i32 = arith.constant 0 : i32
    %c0_i32_0 = arith.constant 0 : i32
    %c0_i32_1 = arith.constant 0 : i32
    return %arg0, %c0_i32, %c0_i32_0 : i32, i32, i32
  }
  func.func @transform_1(%arg0: i32) -> (i32, i32, i32) {
    %c0_i32 = arith.constant 0 : i32
    %c0_i32_0 = arith.constant 0 : i32
    %c0_i32_1 = arith.constant 0 : i32
    %c0_i32_2 = arith.constant 0 : i32
    return %c0_i32, %c0_i32_0, %c0_i32_1 : i32, i32, i32
  }
  func.func @transform_2(%arg0: i32) -> (i32, i32, i32) {
    %c0_i32 = arith.constant 0 : i32
    %c0_i32_0 = arith.constant 0 : i32
    %c0_i32_1 = arith.constant 0 : i32
    %c0_i32_2 = arith.constant 0 : i32
    return %c0_i32, %c0_i32_0, %c0_i32_1 : i32, i32, i32
  }
  func.func @transform_3(%arg0: i32) -> (i32, i32, i32) {
    %c0_i32 = arith.constant 0 : i32
    %c0_i32_0 = arith.constant 0 : i32
    %c0_i32_1 = arith.constant 0 : i32
    %c0_i32_2 = arith.constant 0 : i32
    return %c0_i32, %c0_i32_0, %c0_i32_1 : i32, i32, i32
  }
  func.func @transform_4(%arg0: i32) -> (i32, i32, i32) {
    %c0_i32 = arith.constant 0 : i32
    %c0_i32_0 = arith.constant 0 : i32
    %c0_i32_1 = arith.constant 0 : i32
    %c0_i32_2 = arith.constant 0 : i32
    return %c0_i32, %c0_i32_0, %c0_i32_1 : i32, i32, i32
  }
  func.func @transform_5(%arg0: i32) -> (i32, i32, i32) {
    %c0_i32 = arith.constant 0 : i32
    %c0_i32_0 = arith.constant 0 : i32
    %c0_i32_1 = arith.constant 0 : i32
    %c0_i32_2 = arith.constant 0 : i32
    return %c0_i32, %c0_i32_0, %c0_i32_1 : i32, i32, i32
  }
  func.func @transform_6(%arg0: i32) -> (i32, i32, i32) {
    %c0_i32 = arith.constant 0 : i32
    %c0_i32_0 = arith.constant 0 : i32
    %c0_i32_1 = arith.constant 0 : i32
    %c0_i32_2 = arith.constant 0 : i32
    return %c0_i32, %c0_i32_0, %c0_i32_1 : i32, i32, i32
  }
  func.func @transform_7(%arg0: i32) -> (i32, i32, i32) {
    %c0_i32 = arith.constant 0 : i32
    %c0_i32_0 = arith.constant 0 : i32
    %c0_i32_1 = arith.constant 0 : i32
    %c0_i32_2 = arith.constant 0 : i32
    return %c0_i32, %c0_i32_0, %c0_i32_1 : i32, i32, i32
  }
  func.func @transform_8(%arg0: i32) -> (i32, i32) {
    %c0_i32 = arith.constant 0 : i32
    %c0_i32_0 = arith.constant 0 : i32
    %c0_i32_1 = arith.constant 0 : i32
    return %c0_i32, %c0_i32_0 : i32, i32
  }
  func.func @transform_9(%arg0: i32) -> (i32, i32, i32) {
    %c0_i32 = arith.constant 0 : i32
    %c0_i32_0 = arith.constant 0 : i32
    %c0_i32_1 = arith.constant 0 : i32
    return %arg0, %c0_i32, %c0_i32_0 : i32, i32, i32
  }
  func.func @transform_10(%arg0: i32) -> (i32, i32, i32) {
    %c0_i32 = arith.constant 0 : i32
    %c0_i32_0 = arith.constant 0 : i32
    %c0_i32_1 = arith.constant 0 : i32
    return %arg0, %c0_i32, %c0_i32_0 : i32, i32, i32
  }
}

</mosaic_0001>

<llo_original>
// kernel: tpu_custom_call.1
$region0: #{tpu_custom_call.1}
  #allocation0 [shape = 'u32[]', space=smem, size = 0x4, offset = 0x4, fixed_abs, tag = 'smem constant byte address 0x4 - core index']
  #allocation1 [shape = 'u32[144,128]{1,0:T(1,128)}', space=vmem, size = 0x12000, scoped, tag = 'internal scratch']
  %s0 = inlined_call_operand.vmem [shape: f32[2,8,32], index: 0, kind: input, shape index: {}]
  %s1 = inlined_call_operand.vmem [shape: f32[4,32,8], index: 1, kind: input, shape index: {}]
  %s2 = inlined_call_operand.vmem [shape: f32[4,32,8], index: 2, kind: input, shape index: {}]
  %s3 = inlined_call_operand.vmem [shape: f32[4,32,8], index: 3, kind: input, shape index: {}]
  %s4 = inlined_call_operand.vmem [shape: f32[4,1,8], index: 4, kind: input, shape index: {}]
  %s5 = inlined_call_operand.vmem [shape: f32[4,1,8], index: 5, kind: input, shape index: {}]
  %s6 = inlined_call_operand.vmem [shape: f32[4,1,8], index: 6, kind: input, shape index: {}]
  %s7 = inlined_call_operand.vmem [shape: f32[4,8,32], index: 7, kind: input, shape index: {}]
  %s8 = inlined_call_operand.vmem [shape: f32[1,32], index: 8, kind: input, shape index: {}]
  %s9 = inlined_call_operand.hbm [shape: f32[2,8,32], index: 9, kind: output, shape index: {0}]
  %s10 = inlined_call_operand.hbm [shape: f32[2,8,8], index: 10, kind: output, shape index: {1}]
  %11 = xla_tuple %s9, %s10
  %s12 = sld [smem:[#allocation0]]
  $region77: #{tpu_custom_call.1} parent=0
    _
  %s14 = ssub.s32 1, %s12
  %s15 = scalar_select 0, %s14, %s12
  $region1: #{tpu_custom_call.1} parent=0
    #allocation2 [shape = 'u8[8192]{0}', space=vmem, size = 0x2000, scoped, tag = 'output window, operand 0']
    #allocation3 [shape = 's32[2]{0}', space=sflag, size = 0x8, scoped, tag = 'scoped memory for tpu_custom_call.1']
    #allocation4 [shape = 'u8[8192]{0}', space=vmem, size = 0x2000, scoped, tag = 'output window, operand 1']
    #allocation5 [shape = 's32[2]{0}', space=sflag, size = 0x8, scoped, tag = 'scoped memory for tpu_custom_call.1']
    %16 = vsyncpa [#allocation3], 0
    %s17 = scalar_lea.sflag [#allocation3], 1
    %18 = vsyncpa %s17, 0
    %19 = vsyncpa [#allocation5], 0
    %s20 = scalar_lea.sflag [#allocation5], 1
    %21 = vsyncpa %s20, 0
    loop: start=0, step=1, limit=4
    $region2: #{tpu_custom_call.1} parent=1 // loop_pre_header
      _
    $region3: #{tpu_custom_call.1} parent=1 // loop_header
      %s23 = sphi 0, %s27
      %p24 = scmp.ge.s32.totalorder %s23, 4
      %s33 = sphi 0, %s35
      %s36 = sphi 0, %s33
      %s37 = sphi 0, %s36
      %s53 = sphi 0, %s37
      %s57 = sphi 0, %s57
      %s59 = sphi 0, %s57
      %s60 = sphi 0, %s59
      %s74 = sphi 0, %s60
      %s78 = sphi 0, %s78
      %s80 = sphi 0, %s78
      %s81 = sphi 0, %s80
      %s95 = sphi 0, %s81
      %s99 = sphi 0, %s99
      %s101 = sphi 0, %s99
      %s102 = sphi 0, %s101
      %s116 = sphi 0, %s102
      %s120 = sphi 0, %s120
      %s122 = sphi 0, %s120
      %s123 = sphi 0, %s122
      %s137 = sphi 0, %s123
      %s141 = sphi 0, %s141
      %s143 = sphi 0, %s141
      %s144 = sphi 0, %s143
      %s158 = sphi 0, %s144
      %s162 = sphi 0, %s162
      %s164 = sphi 0, %s162
      %s165 = sphi 0, %s164
      %s179 = sphi 0, %s165
      %s183 = sphi 0, %s183
      %s185 = sphi 0, %s183
      %s186 = sphi 0, %s185
      %s200 = sphi 0, %s186
      %s204 = sphi 0, %s204
      %s206 = sphi 0, %s204
      %s207 = sphi 0, %s206
      %s221 = sphi 0, %s207
      %s227 = sphi 0, %s229
      %s230 = sphi 0, %s227
      %s231 = sphi 0, %s230
      %s247 = sphi 0, %s231
      %s253 = sphi 0, %s255
      %s256 = sphi 0, %s253
      %s257 = sphi 0, %s256
      %s273 = sphi 0, %s257
    $region4: #{tpu_custom_call.1} parent=1 // loop_header_branch
      %26 = sbr.rel (%p24) target = $region8
    $region5: #{tpu_custom_call.1} parent=1 // loop_body
      %s28 = ssub.s32 %s23, 1
      %s29 = ssub.s32 %s23, 2
      %s30 = sadd.s32 %s23, 1
      %s31 = ssub.s32 %s23, %s30
      %p32 = scmp.eq.s32.totalorder %s31, 0
      %s34 = sadd.s32 %s33, 1
      %s35 = scalar_select %p32, %s33, %s34
      %p38 = pneg %p32
      %p39 = scmp.eq.s32.totalorder %s23, 1
      %p40 = por %p38, %p39
      %p41 = scmp.ne.s32.totalorder %s33, %s36
      %p42 = scmp.eq.s32.totalorder %s23, 0
      %p43 = por %p41, %p42
      %p44 = scmp.ne.s32.totalorder %s33, %s36
      %p45 = scmp.eq.s32.totalorder %s28, 1
      %p46 = por %p44, %p45
      %p47 = scmp.ne.s32.totalorder %s36, %s37
      %p48 = scmp.eq.s32.totalorder %s28, 0
      %p49 = por %p47, %p48
      %p50 = scmp.ne.s32.totalorder %s36, %s37
      %p51 = scmp.eq.s32.totalorder %s29, 1
      %p52 = por %p50, %p51
      %p54 = scmp.ne.s32.totalorder %s37, %s53
      %p55 = scmp.eq.s32.totalorder %s29, 0
      %p56 = por %p54, %p55
      %s58 = sadd.s32 %s57, 1
      %p61 = scmp.eq.s32.totalorder %s23, 1
      %p62 = scmp.ne.s32.totalorder %s57, %s59
      %p63 = scmp.eq.s32.totalorder %s23, 0
      %p64 = por %p62, %p63
      %p65 = scmp.ne.s32.totalorder %s57, %s59
      %p66 = scmp.eq.s32.totalorder %s28, 1
      %p67 = por %p65, %p66
      %p68 = scmp.ne.s32.totalorder %s59, %s60
      %p69 = scmp.eq.s32.totalorder %s28, 0
      %p70 = por %p68, %p69
      %p71 = scmp.ne.s32.totalorder %s59, %s60
      %p72 = scmp.eq.s32.totalorder %s29, 1
      %p73 = por %p71, %p72
      %p75 = scmp.ne.s32.totalorder %s60, %s74
      %p76 = scmp.eq.s32.totalorder %s29, 0
      %p77 = por %p75, %p76
      %s79 = sadd.s32 %s78, 1
      %p82 = scmp.eq.s32.totalorder %s23, 1
      %p83 = scmp.ne.s32.totalorder %s78, %s80
      %p84 = scmp.eq.s32.totalorder %s23, 0
      %p85 = por %p83, %p84
      %p86 = scmp.ne.s32.totalorder %s78, %s80
      %p87 = scmp.eq.s32.totalorder %s28, 1
      %p88 = por %p86, %p87
      %p89 = scmp.ne.s32.totalorder %s80, %s81
      %p90 = scmp.eq.s32.totalorder %s28, 0
      %p91 = por %p89, %p90
      %p92 = scmp.ne.s32.totalorder %s80, %s81
      %p93 = scmp.eq.s32.totalorder %s29, 1
      %p94 = por %p92, %p93
      %p96 = scmp.ne.s32.totalorder %s81, %s95
      %p97 = scmp.eq.s32.totalorder %s29, 0
      %p98 = por %p96, %p97
      %s100 = sadd.s32 %s99, 1
      %p103 = scmp.eq.s32.totalorder %s23, 1
      %p104 = scmp.ne.s32.totalorder %s99, %s101
      %p105 = scmp.eq.s32.totalorder %s23, 0
      %p106 = por %p104, %p105
      %p107 = scmp.ne.s32.totalorder %s99, %s101
      %p108 = scmp.eq.s32.totalorder %s28, 1
      %p109 = por %p107, %p108
      %p110 = scmp.ne.s32.totalorder %s101, %s102
      %p111 = scmp.eq.s32.totalorder %s28, 0
      %p112 = por %p110, %p111
      %p113 = scmp.ne.s32.totalorder %s101, %s102
      %p114 = scmp.eq.s32.totalorder %s29, 1
      %p115 = por %p113, %p114
      %p117 = scmp.ne.s32.totalorder %s102, %s116
      %p118 = scmp.eq.s32.totalorder %s29, 0
      %p119 = por %p117, %p118
      %s121 = sadd.s32 %s120, 1
      %p124 = scmp.eq.s32.totalorder %s23, 1
      %p125 = scmp.ne.s32.totalorder %s120, %s122
      %p126 = scmp.eq.s32.totalorder %s23, 0
      %p127 = por %p125, %p126
      %p128 = scmp.ne.s32.totalorder %s120, %s122
      %p129 = scmp.eq.s32.totalorder %s28, 1
      %p130 = por %p128, %p129
      %p131 = scmp.ne.s32.totalorder %s122, %s123
      %p132 = scmp.eq.s32.totalorder %s28, 0
      %p133 = por %p131, %p132
      %p134 = scmp.ne.s32.totalorder %s122, %s123
      %p135 = scmp.eq.s32.totalorder %s29, 1
      %p136 = por %p134, %p135
      %p138 = scmp.ne.s32.totalorder %s123, %s137
      %p139 = scmp.eq.s32.totalorder %s29, 0
      %p140 = por %p138, %p139
      %s142 = sadd.s32 %s141, 1
      %p145 = scmp.eq.s32.totalorder %s23, 1
      %p146 = scmp.ne.s32.totalorder %s141, %s143
      %p147 = scmp.eq.s32.totalorder %s23, 0
      %p148 = por %p146, %p147
      %p149 = scmp.ne.s32.totalorder %s141, %s143
      %p150 = scmp.eq.s32.totalorder %s28, 1
      %p151 = por %p149, %p150
      %p152 = scmp.ne.s32.totalorder %s143, %s144
      %p153 = scmp.eq.s32.totalorder %s28, 0
      %p154 = por %p152, %p153
      %p155 = scmp.ne.s32.totalorder %s143, %s144
      %p156 = scmp.eq.s32.totalorder %s29, 1
      %p157 = por %p155, %p156
      %p159 = scmp.ne.s32.totalorder %s144, %s158
      %p160 = scmp.eq.s32.totalorder %s29, 0
      %p161 = por %p159, %p160
      %s163 = sadd.s32 %s162, 1
      %p166 = scmp.eq.s32.totalorder %s23, 1
      %p167 = scmp.ne.s32.totalorder %s162, %s164
      %p168 = scmp.eq.s32.totalorder %s23, 0
      %p169 = por %p167, %p168
      %p170 = scmp.ne.s32.totalorder %s162, %s164
      %p171 = scmp.eq.s32.totalorder %s28, 1
      %p172 = por %p170, %p171
      %p173 = scmp.ne.s32.totalorder %s164, %s165
      %p174 = scmp.eq.s32.totalorder %s28, 0
      %p175 = por %p173, %p174
      %p176 = scmp.ne.s32.totalorder %s164, %s165
      %p177 = scmp.eq.s32.totalorder %s29, 1
      %p178 = por %p176, %p177
      %p180 = scmp.ne.s32.totalorder %s165, %s179
      %p181 = scmp.eq.s32.totalorder %s29, 0
      %p182 = por %p180, %p181
      %s184 = sadd.s32 %s183, 1
      %p187 = scmp.eq.s32.totalorder %s23, 1
      %p188 = scmp.ne.s32.totalorder %s183, %s185
      %p189 = scmp.eq.s32.totalorder %s23, 0
      %p190 = por %p188, %p189
      %p191 = scmp.ne.s32.totalorder %s183, %s185
      %p192 = scmp.eq.s32.totalorder %s28, 1
      %p193 = por %p191, %p192
      %p194 = scmp.ne.s32.totalorder %s185, %s186
      %p195 = scmp.eq.s32.totalorder %s28, 0
      %p196 = por %p194, %p195
      %p197 = scmp.ne.s32.totalorder %s185, %s186
      %p198 = scmp.eq.s32.totalorder %s29, 1
      %p199 = por %p197, %p198
      %p201 = scmp.ne.s32.totalorder %s186, %s200
      %p202 = scmp.eq.s32.totalorder %s29, 0
      %p203 = por %p201, %p202
      %s205 = sadd.s32 %s204, 1
      %p208 = scmp.eq.s32.totalorder %s23, 1
      %p209 = scmp.ne.s32.totalorder %s204, %s206
      %p210 = scmp.eq.s32.totalorder %s23, 0
      %p211 = por %p209, %p210
      %p212 = scmp.ne.s32.totalorder %s204, %s206
      %p213 = scmp.eq.s32.totalorder %s28, 1
      %p214 = por %p212, %p213
      %p215 = scmp.ne.s32.totalorder %s206, %s207
      %p216 = scmp.eq.s32.totalorder %s28, 0
      %p217 = por %p215, %p216
      %p218 = scmp.ne.s32.totalorder %s206, %s207
      %p219 = scmp.eq.s32.totalorder %s29, 1
      %p220 = por %p218, %p219
      %p222 = scmp.ne.s32.totalorder %s207, %s221
      %p223 = scmp.eq.s32.totalorder %s29, 0
      %p224 = por %p222, %p223
      %s225 = ssub.s32 %s23, %s30
      %p226 = scmp.eq.s32.totalorder %s225, 0
      %s228 = sadd.s32 %s227, 1
      %s229 = scalar_select %p226, %s227, %s228
      %p232 = pneg %p226
      %p233 = scmp.eq.s32.totalorder %s23, 1
      %p234 = por %p232, %p233
      %p235 = scmp.ne.s32.totalorder %s227, %s230
      %p236 = scmp.eq.s32.totalorder %s23, 0
      %p237 = por %p235, %p236
      %p238 = scmp.ne.s32.totalorder %s227, %s230
      %p239 = scmp.eq.s32.totalorder %s28, 1
      %p240 = por %p238, %p239
      %p241 = scmp.ne.s32.totalorder %s230, %s231
      %p242 = scmp.eq.s32.totalorder %s28, 0
      %p243 = por %p241, %p242
      %p244 = scmp.ne.s32.totalorder %s230, %s231
      %p245 = scmp.eq.s32.totalorder %s29, 1
      %p246 = por %p244, %p245
      %p248 = scmp.ne.s32.totalorder %s231, %s247
      %p249 = scmp.eq.s32.totalorder %s29, 0
      %p250 = por %p248, %p249
      %s251 = ssub.s32 %s23, %s30
      %p252 = scmp.eq.s32.totalorder %s251, 0
      %s254 = sadd.s32 %s253, 1
      %s255 = scalar_select %p252, %s253, %s254
      %p258 = pneg %p252
      %p259 = scmp.eq.s32.totalorder %s23, 1
      %p260 = por %p258, %p259
      %p261 = scmp.ne.s32.totalorder %s253, %s256
      %p262 = scmp.eq.s32.totalorder %s23, 0
      %p263 = por %p261, %p262
      %p264 = scmp.ne.s32.totalorder %s253, %s256
      %p265 = scmp.eq.s32.totalorder %s28, 1
      %p266 = por %p264, %p265
      %p267 = scmp.ne.s32.totalorder %s256, %s257
      %p268 = scmp.eq.s32.totalorder %s28, 0
      %p269 = por %p267, %p268
      %p270 = scmp.ne.s32.totalorder %s256, %s257
      %p271 = scmp.eq.s32.totalorder %s29, 1
      %p272 = por %p270, %p271
      %p274 = scmp.ne.s32.totalorder %s257, %s273
      %p275 = scmp.eq.s32.totalorder %s29, 0
      %p276 = por %p274, %p275
      %p277 = scmp.le.s32.totalorder 1, %s23
      %p278 = scmp.lt.s32.totalorder %s23, 3
      %p279 = pnand %p277, %p278
      %p280 = pneg %p279
      // Predicated region
      $region9: #{tpu_custom_call.1} parent=5 // pred_check
        _
      $region10: #{tpu_custom_call.1} parent=5 // pred_check_branch
        %282 = sbr.rel (%p279) target = $region12
      $region11: #{tpu_custom_call.1} parent=5 // pred_region
        %s283 = ssub.s32 %s23, 1
        // Predicated region
        $region13: #{tpu_custom_call.1} parent=11 // pred_check
          %p284 = pneg %p70
        $region14: #{tpu_custom_call.1} parent=11 // pred_check_branch
          %286 = sbr.rel (%p284) target = $region16
        $region15: #{tpu_custom_call.1} parent=11 // pred_region
          _
        $region16: #{tpu_custom_call.1} parent=11 // pred_fallthru
          _
        // Predicated region
        $region17: #{tpu_custom_call.1} parent=11 // pred_check
          %p287 = pneg %p91
        $region18: #{tpu_custom_call.1} parent=11 // pred_check_branch
          %289 = sbr.rel (%p287) target = $region20
        $region19: #{tpu_custom_call.1} parent=11 // pred_region
          _
        $region20: #{tpu_custom_call.1} parent=11 // pred_fallthru
          _
        // Predicated region
        $region21: #{tpu_custom_call.1} parent=11 // pred_check
          %p290 = pneg %p112
        $region22: #{tpu_custom_call.1} parent=11 // pred_check_branch
          %292 = sbr.rel (%p290) target = $region24
        $region23: #{tpu_custom_call.1} parent=11 // pred_region
          _
        $region24: #{tpu_custom_call.1} parent=11 // pred_fallthru
          _
        // Predicated region
        $region25: #{tpu_custom_call.1} parent=11 // pred_check
          %p293 = pneg %p133
        $region26: #{tpu_custom_call.1} parent=11 // pred_check_branch
          %295 = sbr.rel (%p293) target = $region28
        $region27: #{tpu_custom_call.1} parent=11 // pred_region
          _
        $region28: #{tpu_custom_call.1} parent=11 // pred_fallthru
          _
        // Predicated region
        $region29: #{tpu_custom_call.1} parent=11 // pred_check
          %p296 = pneg %p154
        $region30: #{tpu_custom_call.1} parent=11 // pred_check_branch
          %298 = sbr.rel (%p296) target = $region32
        $region31: #{tpu_custom_call.1} parent=11 // pred_region
          _
        $region32: #{tpu_custom_call.1} parent=11 // pred_fallthru
          _
        // Predicated region
        $region33: #{tpu_custom_call.1} parent=11 // pred_check
          %p299 = pneg %p175
        $region34: #{tpu_custom_call.1} parent=11 // pred_check_branch
          %301 = sbr.rel (%p299) target = $region36
        $region35: #{tpu_custom_call.1} parent=11 // pred_region
          _
        $region36: #{tpu_custom_call.1} parent=11 // pred_fallthru
          _
        // Predicated region
        $region37: #{tpu_custom_call.1} parent=11 // pred_check
          %p302 = pneg %p196
        $region38: #{tpu_custom_call.1} parent=11 // pred_check_branch
          %304 = sbr.rel (%p302) target = $region40
        $region39: #{tpu_custom_call.1} parent=11 // pred_region
          _
        $region40: #{tpu_custom_call.1} parent=11 // pred_fallthru
          _
        // Predicated region
        $region41: #{tpu_custom_call.1} parent=11 // pred_check
          %p305 = pneg %p217
        $region42: #{tpu_custom_call.1} parent=11 // pred_check_branch
          %307 = sbr.rel (%p305) target = $region44
        $region43: #{tpu_custom_call.1} parent=11 // pred_region
          _
        $region44: #{tpu_custom_call.1} parent=11 // pred_fallthru
          _
      $region12: #{tpu_custom_call.1} parent=5 // pred_fallthru
        _
      %p308 = scmp.lt.s32.totalorder %s23, 2
      // Predicated region
      $region45: #{tpu_custom_call.1} parent=5 // pred_check
        %p309 = pneg %p308
      $region46: #{tpu_custom_call.1} parent=5 // pred_check_branch
        %311 = sbr.rel (%p309) target = $region48
      $region47: #{tpu_custom_call.1} parent=5 // pred_region
        // Predicated region
        $region49: #{tpu_custom_call.1} parent=47 // pred_check
          %p312 = pneg %p43
        $region50: #{tpu_custom_call.1} parent=47 // pred_check_branch
          %314 = sbr.rel (%p312) target = $region52
        $region51: #{tpu_custom_call.1} parent=47 // pred_region
          %p315 = scmp.lt.s32.totalorder %s23, 1
          %s316 = scalar_select %p315, %s23, 1
          %s317 = smul.addr %s316, 8
          %s318 = scalar_lea.vmem %s0, %s317
        $region52: #{tpu_custom_call.1} parent=47 // pred_fallthru
          _
      $region48: #{tpu_custom_call.1} parent=5 // pred_fallthru
        _
      %p319 = scmp.le.s32.totalorder 1, %s23
      %p320 = scmp.lt.s32.totalorder %s23, 3
      %p321 = pnand %p319, %p320
      %p322 = pneg %p321
      // Predicated region
      $region53: #{tpu_custom_call.1} parent=5 // pred_check
        _
      $region54: #{tpu_custom_call.1} parent=5 // pred_check_branch
        %324 = sbr.rel (%p321) target = $region56
      $region55: #{tpu_custom_call.1} parent=5 // pred_region
        %s325 = ssub.s32 %s23, 1
        %p326 = scmp.lt.s32.totalorder %s28, 1
        %s327 = scalar_select %p326, %s28, 1
        %s328 = smul.addr %s327, 8
        %s329 = scalar_lea.vmem %s0, %s328
        %p330 = pneg %p49
        %p331 = pneg %p46
        %p332 = pneg %p70
        %p333 = pneg %p67
        %p334 = pneg %p91
        %p335 = pneg %p88
        %p336 = pneg %p112
        %p337 = pneg %p109
        %p338 = pneg %p133
        %p339 = pneg %p130
        %p340 = pneg %p154
        %p341 = pneg %p151
        %p342 = pneg %p175
        %p343 = pneg %p172
        %p344 = pneg %p196
        %p345 = pneg %p193
        %p346 = pneg %p217
        %p347 = pneg %p214
        %p348 = pneg %p243
        %p349 = pneg %p240
        %s350 = sand.u32 %s230, 1
        %s351 = scalar_lea.sflag [#allocation3], %s350
        %s352 = sand.u32 %s230, 1
        %s353 = smul.addr %s352, 8
        %s354 = scalar_lea.vmem [#allocation2], %s353
        %p355 = pneg %p269
        %p356 = pneg %p266
        %s357 = sand.u32 %s256, 1
        %s358 = scalar_lea.sflag [#allocation5], %s357
        %s359 = sand.u32 %s256, 1
        %s360 = smul.addr %s359, 8
        %s361 = scalar_lea.vmem [#allocation4], %s360
        %p362 = scmp.lt.s32.totalorder %s28, 1
        %s363 = scalar_select %p362, %s28, 1
        %s364 = smul.addr %s363, 8
        %s365 = scalar_lea.vmem %s0, %s364
        %v366 = vld [vmem:[%s365] sm:$0xff]
        %v367 = vld [vmem:[%s1] sm:$0xff]
        %v368 = vld [vmem:[%s1 + $0x8] sm:$0xff]
        %v369 = vld [vmem:[%s1 + $0x10] sm:$0xff]
        %v370 = vld [vmem:[%s1 + $0x18] sm:$0xff]
        %v371 = vld [vmem:[%s1 + $0x20] sm:$0xff]
        %v372 = vld [vmem:[%s1 + $0x28] sm:$0xff]
        %v373 = vld [vmem:[%s1 + $0x30] sm:$0xff]
        %v374 = vld [vmem:[%s1 + $0x38] sm:$0xff]
        %v375 = vld [vmem:[%s1 + $0x40] sm:$0xff]
        %v376 = vld [vmem:[%s1 + $0x48] sm:$0xff]
        %v377 = vld [vmem:[%s1 + $0x50] sm:$0xff]
        %v378 = vld [vmem:[%s1 + $0x58] sm:$0xff]
        %v379 = vld [vmem:[%s1 + $0x60] sm:$0xff]
        %v380 = vld [vmem:[%s1 + $0x68] sm:$0xff]
        %v381 = vld [vmem:[%s1 + $0x70] sm:$0xff]
        %v382 = vld [vmem:[%s1 + $0x78] sm:$0xff]
        %v383 = vld [vmem:[%s4] sm:$0x1]
        %v384 = vld [vmem:[%s4 + $0x1] sm:$0x1]
        %v385 = vld [vmem:[%s4 + $0x2] sm:$0x1]
        %v386 = vld [vmem:[%s4 + $0x3] sm:$0x1]
        %v391 = vlaneseq
        %v392 = vshrl.u32 %v391, 7
        %v393 = vsub.s32 0, %v392
        %v394 = vrot.slane %v383, %v393
        %v395 = vlaneseq
        %v396 = vshrl.u32 %v395, 7
        %v397 = vsub.s32 0, %v396
        %v398 = vrot.slane %v384, %v397
        %v399 = vlaneseq
        %v400 = vshrl.u32 %v399, 7
        %v401 = vsub.s32 0, %v400
        %v402 = vrot.slane %v385, %v401
        %v403 = vlaneseq
        %v404 = vshrl.u32 %v403, 7
        %v405 = vsub.s32 0, %v404
        %v406 = vrot.slane %v386, %v405
        %vm411 = vcmask 261120
        %v413 = vsel %vm411, %v366, 0
        %415 = vmatprep.subr.mxu0 0.0
        %416 = vmatpush1.msra.mxu0 %v367
        %417 = vmatprep.subr.mxu0 0.0
        %418 = vmatpush1.msra.mxu0 %v368
        %419 = vmatprep.subr.mxu0 0.0
        %420 = vmatpush1.msra.mxu0 %v369
        %421 = vmatprep.subr.mxu0 0.0
        %422 = vmatpush1.msra.mxu0 %v370
        %423 = vmatprep.subr.mxu0 0.0
        %424 = vmatpush1.msra.mxu0 0.0
        %425 = vmatprep.subr.mxu0 0.0
        %426 = vmatpush1.msra.mxu0 0.0
        %427 = vmatprep.subr.mxu0 0.0
        %428 = vmatpush1.msra.mxu0 0.0
        %429 = vmatprep.subr.mxu0 0.0
        %430 = vmatpush1.msra.mxu0 0.0
        %431 = vmatprep.subr.mxu0 0.0
        %432 = vmatpush1.msra.mxu0 0.0
        %433 = vmatprep.subr.mxu0 0.0
        %434 = vmatpush1.msra.mxu0 0.0
        %435 = vmatprep.subr.mxu0 0.0
        %436 = vmatpush1.msra.mxu0 0.0
        %437 = vmatprep.subr.mxu0 0.0
        %438 = vmatpush1.msra.mxu0 0.0
        %439 = vmatprep.subr.mxu0 0.0
        %440 = vmatpush1.msra.mxu0 0.0
        %441 = vmatprep.subr.mxu0 0.0
        %442 = vmatpush1.msra.mxu0 0.0
        %443 = vmatprep.subr.mxu0 0.0
        %444 = vmatpush1.msra.mxu0 0.0
        %445 = vmatprep.subr.mxu0 0.0
        %446 = vmatpush1.msra.mxu0 0.0
        %447 = vmatprep.subr.mxu0 0.0
        %448 = vmatpush1.msra.mxu0 0.0
        %449 = vmatprep.subr.mxu0 0.0
        %450 = vmatpush1.msra.mxu0 0.0
        %451 = vmatprep.subr.mxu0 0.0
        %452 = vmatpush1.msra.mxu0 0.0
        %453 = vmatprep.subr.mxu0 0.0
        %454 = vmatpush1.msra.mxu0 0.0
        %455 = vmatprep.subr.mxu0 0.0
        %456 = vmatpush1.msra.mxu0 0.0
        %457 = vmatprep.subr.mxu0 0.0
        %458 = vmatpush1.msra.mxu0 0.0
        %459 = vmatprep.subr.mxu0 0.0
        %460 = vmatpush1.msra.mxu0 0.0
        %461 = vmatprep.subr.mxu0 0.0
        %462 = vmatpush1.msra.mxu0 0.0
        %463 = vmatprep.subr.mxu0 0.0
        %464 = vmatpush1.msra.mxu0 0.0
        %465 = vmatprep.subr.mxu0 0.0
        %466 = vmatpush1.msra.mxu0 0.0
        %467 = vmatprep.subr.mxu0 0.0
        %468 = vmatpush1.msra.mxu0 0.0
        %469 = vmatprep.subr.mxu0 0.0
        %470 = vmatpush1.msra.mxu0 0.0
        %471 = vmatprep.subr.mxu0 0.0
        %472 = vmatpush1.msra.mxu0 0.0
        %473 = vmatprep.subr.mxu0 0.0
        %474 = vmatpush1.msra.mxu0 0.0
        %475 = vmatprep.subr.mxu0 0.0
        %476 = vmatpush1.msra.mxu0 0.0
        %477 = vmatprep.subr.mxu0 0.0
        %478 = vmatpush1.msra.mxu0 0.0
        %479 = vmatprep.mubr.f32.mxu0 0.0
        %480 = vmatmul.mubr.f32.gmra.mrb[0].mxu0 %v413
        %v481 = vpop.f32.mrb[0].mxu0
        %v482 = vadd.f32 %v394, %v481
        %v483 = vpop.f32.mrb[0].mxu0
        %484 = vdwg.mxu0
        %485 = vmatprep.subr.mxu0 0.0
        %486 = vmatpush1.msra.mxu0 %v371
        %487 = vmatprep.subr.mxu0 0.0
        %488 = vmatpush1.msra.mxu0 %v372
        %489 = vmatprep.subr.mxu0 0.0
        %490 = vmatpush1.msra.mxu0 %v373
        %491 = vmatprep.subr.mxu0 0.0
        %492 = vmatpush1.msra.mxu0 %v374
        %493 = vmatprep.subr.mxu0 0.0
        %494 = vmatpush1.msra.mxu0 0.0
        %495 = vmatprep.subr.mxu0 0.0
        %496 = vmatpush1.msra.mxu0 0.0
        %497 = vmatprep.subr.mxu0 0.0
        %498 = vmatpush1.msra.mxu0 0.0
        %499 = vmatprep.subr.mxu0 0.0
        %500 = vmatpush1.msra.mxu0 0.0
        %501 = vmatprep.subr.mxu0 0.0
        %502 = vmatpush1.msra.mxu0 0.0
        %503 = vmatprep.subr.mxu0 0.0
        %504 = vmatpush1.msra.mxu0 0.0
        %505 = vmatprep.subr.mxu0 0.0
        %506 = vmatpush1.msra.mxu0 0.0
        %507 = vmatprep.subr.mxu0 0.0
        %508 = vmatpush1.msra.mxu0 0.0
        %509 = vmatprep.subr.mxu0 0.0
        %510 = vmatpush1.msra.mxu0 0.0
        %511 = vmatprep.subr.mxu0 0.0
        %512 = vmatpush1.msra.mxu0 0.0
        %513 = vmatprep.subr.mxu0 0.0
        %514 = vmatpush1.msra.mxu0 0.0
        %515 = vmatprep.subr.mxu0 0.0
        %516 = vmatpush1.msra.mxu0 0.0
        %517 = vmatprep.subr.mxu0 0.0
        %518 = vmatpush1.msra.mxu0 0.0
        %519 = vmatprep.subr.mxu0 0.0
        %520 = vmatpush1.msra.mxu0 0.0
        %521 = vmatprep.subr.mxu0 0.0
        %522 = vmatpush1.msra.mxu0 0.0
        %523 = vmatprep.subr.mxu0 0.0
        %524 = vmatpush1.msra.mxu0 0.0
        %525 = vmatprep.subr.mxu0 0.0
        %526 = vmatpush1.msra.mxu0 0.0
        %527 = vmatprep.subr.mxu0 0.0
        %528 = vmatpush1.msra.mxu0 0.0
        %529 = vmatprep.subr.mxu0 0.0
        %530 = vmatpush1.msra.mxu0 0.0
        %531 = vmatprep.subr.mxu0 0.0
        %532 = vmatpush1.msra.mxu0 0.0
        %533 = vmatprep.subr.mxu0 0.0
        %534 = vmatpush1.msra.mxu0 0.0
        %535 = vmatprep.subr.mxu0 0.0
        %536 = vmatpush1.msra.mxu0 0.0
        %537 = vmatprep.subr.mxu0 0.0
        %538 = vmatpush1.msra.mxu0 0.0
        %539 = vmatprep.subr.mxu0 0.0
        %540 = vmatpush1.msra.mxu0 0.0
        %541 = vmatprep.subr.mxu0 0.0
        %542 = vmatpush1.msra.mxu0 0.0
        %543 = vmatprep.subr.mxu0 0.0
        %544 = vmatpush1.msra.mxu0 0.0
        %545 = vmatprep.subr.mxu0 0.0
        %546 = vmatpush1.msra.mxu0 0.0
        %547 = vmatprep.subr.mxu0 0.0
        %548 = vmatpush1.msra.mxu0 0.0
        %549 = vmatprep.mubr.f32.mxu0 0.0
        %550 = vmatmul.mubr.f32.gmra.mrb[0].mxu0 %v413
        %v551 = vpop.f32.mrb[0].mxu0
        %v552 = vadd.f32 %v398, %v551
        %v553 = vpop.f32.mrb[0].mxu0
        %554 = vdwg.mxu0
        %555 = vmatprep.subr.mxu0 0.0
        %556 = vmatpush1.msra.mxu0 %v375
        %557 = vmatprep.subr.mxu0 0.0
        %558 = vmatpush1.msra.mxu0 %v376
        %559 = vmatprep.subr.mxu0 0.0
        %560 = vmatpush1.msra.mxu0 %v377
        %561 = vmatprep.subr.mxu0 0.0
        %562 = vmatpush1.msra.mxu0 %v378
        %563 = vmatprep.subr.mxu0 0.0
        %564 = vmatpush1.msra.mxu0 0.0
        %565 = vmatprep.subr.mxu0 0.0
        %566 = vmatpush1.msra.mxu0 0.0
        %567 = vmatprep.subr.mxu0 0.0
        %568 = vmatpush1.msra.mxu0 0.0
        %569 = vmatprep.subr.mxu0 0.0
        %570 = vmatpush1.msra.mxu0 0.0
        %571 = vmatprep.subr.mxu0 0.0
        %572 = vmatpush1.msra.mxu0 0.0
        %573 = vmatprep.subr.mxu0 0.0
        %574 = vmatpush1.msra.mxu0 0.0
        %575 = vmatprep.subr.mxu0 0.0
        %576 = vmatpush1.msra.mxu0 0.0
        %577 = vmatprep.subr.mxu0 0.0
        %578 = vmatpush1.msra.mxu0 0.0
        %579 = vmatprep.subr.mxu0 0.0
        %580 = vmatpush1.msra.mxu0 0.0
        %581 = vmatprep.subr.mxu0 0.0
        %582 = vmatpush1.msra.mxu0 0.0
        %583 = vmatprep.subr.mxu0 0.0
        %584 = vmatpush1.msra.mxu0 0.0
        %585 = vmatprep.subr.mxu0 0.0
        %586 = vmatpush1.msra.mxu0 0.0
        %587 = vmatprep.subr.mxu0 0.0
        %588 = vmatpush1.msra.mxu0 0.0
        %589 = vmatprep.subr.mxu0 0.0
        %590 = vmatpush1.msra.mxu0 0.0
        %591 = vmatprep.subr.mxu0 0.0
        %592 = vmatpush1.msra.mxu0 0.0
        %593 = vmatprep.subr.mxu0 0.0
        %594 = vmatpush1.msra.mxu0 0.0
        %595 = vmatprep.subr.mxu0 0.0
        %596 = vmatpush1.msra.mxu0 0.0
        %597 = vmatprep.subr.mxu0 0.0
        %598 = vmatpush1.msra.mxu0 0.0
        %599 = vmatprep.subr.mxu0 0.0
        %600 = vmatpush1.msra.mxu0 0.0
        %601 = vmatprep.subr.mxu0 0.0
        %602 = vmatpush1.msra.mxu0 0.0
        %603 = vmatprep.subr.mxu0 0.0
        %604 = vmatpush1.msra.mxu0 0.0
        %605 = vmatprep.subr.mxu0 0.0
        %606 = vmatpush1.msra.mxu0 0.0
        %607 = vmatprep.subr.mxu0 0.0
        %608 = vmatpush1.msra.mxu0 0.0
        %609 = vmatprep.subr.mxu0 0.0
        %610 = vmatpush1.msra.mxu0 0.0
        %611 = vmatprep.subr.mxu0 0.0
        %612 = vmatpush1.msra.mxu0 0.0
        %613 = vmatprep.subr.mxu0 0.0
        %614 = vmatpush1.msra.mxu0 0.0
        %615 = vmatprep.subr.mxu0 0.0
        %616 = vmatpush1.msra.mxu0 0.0
        %617 = vmatprep.subr.mxu0 0.0
        %618 = vmatpush1.msra.mxu0 0.0
        %619 = vmatprep.mubr.f32.mxu0 0.0
        %620 = vmatmul.mubr.f32.gmra.mrb[0].mxu0 %v413
        %v621 = vpop.f32.mrb[0].mxu0
        %v622 = vadd.f32 %v402, %v621
        %v623 = vpop.f32.mrb[0].mxu0
        %624 = vdwg.mxu0
        %625 = vmatprep.subr.mxu0 0.0
        %626 = vmatpush1.msra.mxu0 %v379
        %627 = vmatprep.subr.mxu0 0.0
        %628 = vmatpush1.msra.mxu0 %v380
        %629 = vmatprep.subr.mxu0 0.0
        %630 = vmatpush1.msra.mxu0 %v381
        %631 = vmatprep.subr.mxu0 0.0
        %632 = vmatpush1.msra.mxu0 %v382
        %633 = vmatprep.subr.mxu0 0.0
        %634 = vmatpush1.msra.mxu0 0.0
        %635 = vmatprep.subr.mxu0 0.0
        %636 = vmatpush1.msra.mxu0 0.0
        %637 = vmatprep.subr.mxu0 0.0
        %638 = vmatpush1.msra.mxu0 0.0
        %639 = vmatprep.subr.mxu0 0.0
        %640 = vmatpush1.msra.mxu0 0.0
        %641 = vmatprep.subr.mxu0 0.0
        %642 = vmatpush1.msra.mxu0 0.0
        %643 = vmatprep.subr.mxu0 0.0
        %644 = vmatpush1.msra.mxu0 0.0
        %645 = vmatprep.subr.mxu0 0.0
        %646 = vmatpush1.msra.mxu0 0.0
        %647 = vmatprep.subr.mxu0 0.0
        %648 = vmatpush1.msra.mxu0 0.0
        %649 = vmatprep.subr.mxu0 0.0
        %650 = vmatpush1.msra.mxu0 0.0
        %651 = vmatprep.subr.mxu0 0.0
        %652 = vmatpush1.msra.mxu0 0.0
        %653 = vmatprep.subr.mxu0 0.0
        %654 = vmatpush1.msra.mxu0 0.0
        %655 = vmatprep.subr.mxu0 0.0
        %656 = vmatpush1.msra.mxu0 0.0
        %657 = vmatprep.subr.mxu0 0.0
        %658 = vmatpush1.msra.mxu0 0.0
        %659 = vmatprep.subr.mxu0 0.0
        %660 = vmatpush1.msra.mxu0 0.0
        %661 = vmatprep.subr.mxu0 0.0
        %662 = vmatpush1.msra.mxu0 0.0
        %663 = vmatprep.subr.mxu0 0.0
        %664 = vmatpush1.msra.mxu0 0.0
        %665 = vmatprep.subr.mxu0 0.0
        %666 = vmatpush1.msra.mxu0 0.0
        %667 = vmatprep.subr.mxu0 0.0
        %668 = vmatpush1.msra.mxu0 0.0
        %669 = vmatprep.subr.mxu0 0.0
        %670 = vmatpush1.msra.mxu0 0.0
        %671 = vmatprep.subr.mxu0 0.0
        %672 = vmatpush1.msra.mxu0 0.0
        %673 = vmatprep.subr.mxu0 0.0
        %674 = vmatpush1.msra.mxu0 0.0
        %675 = vmatprep.subr.mxu0 0.0
        %676 = vmatpush1.msra.mxu0 0.0
        %677 = vmatprep.subr.mxu0 0.0
        %678 = vmatpush1.msra.mxu0 0.0
        %679 = vmatprep.subr.mxu0 0.0
        %680 = vmatpush1.msra.mxu0 0.0
        %681 = vmatprep.subr.mxu0 0.0
        %682 = vmatpush1.msra.mxu0 0.0
        %683 = vmatprep.subr.mxu0 0.0
        %684 = vmatpush1.msra.mxu0 0.0
        %685 = vmatprep.subr.mxu0 0.0
        %686 = vmatpush1.msra.mxu0 0.0
        %687 = vmatprep.subr.mxu0 0.0
        %688 = vmatpush1.msra.mxu0 0.0
        %689 = vmatprep.mubr.f32.mxu0 0.0
        %690 = vmatmul.mubr.f32.gmra.mrb[0].mxu0 %v413
        %v691 = vpop.f32.mrb[0].mxu0
        %v692 = vadd.f32 %v406, %v691
        %v693 = vpop.f32.mrb[0].mxu0
        %694 = vdwg.mxu0
        %v695 = vld [vmem:[%s2] sm:$0xff]
        %v696 = vld [vmem:[%s2 + $0x8] sm:$0xff]
        %v697 = vld [vmem:[%s2 + $0x10] sm:$0xff]
        %v698 = vld [vmem:[%s2 + $0x18] sm:$0xff]
        %v699 = vld [vmem:[%s2 + $0x20] sm:$0xff]
        %v700 = vld [vmem:[%s2 + $0x28] sm:$0xff]
        %v701 = vld [vmem:[%s2 + $0x30] sm:$0xff]
        %v702 = vld [vmem:[%s2 + $0x38] sm:$0xff]
        %v703 = vld [vmem:[%s2 + $0x40] sm:$0xff]
        %v704 = vld [vmem:[%s2 + $0x48] sm:$0xff]
        %v705 = vld [vmem:[%s2 + $0x50] sm:$0xff]
        %v706 = vld [vmem:[%s2 + $0x58] sm:$0xff]
        %v707 = vld [vmem:[%s2 + $0x60] sm:$0xff]
        %v708 = vld [vmem:[%s2 + $0x68] sm:$0xff]
        %v709 = vld [vmem:[%s2 + $0x70] sm:$0xff]
        %v710 = vld [vmem:[%s2 + $0x78] sm:$0xff]
        %v711 = vld [vmem:[%s5] sm:$0x1]
        %v712 = vld [vmem:[%s5 + $0x1] sm:$0x1]
        %v713 = vld [vmem:[%s5 + $0x2] sm:$0x1]
        %v714 = vld [vmem:[%s5 + $0x3] sm:$0x1]
        %v719 = vlaneseq
        %v720 = vshrl.u32 %v719, 7
        %v721 = vsub.s32 0, %v720
        %v722 = vrot.slane %v711, %v721
        %v723 = vlaneseq
        %v724 = vshrl.u32 %v723, 7
        %v725 = vsub.s32 0, %v724
        %v726 = vrot.slane %v712, %v725
        %v727 = vlaneseq
        %v728 = vshrl.u32 %v727, 7
        %v729 = vsub.s32 0, %v728
        %v730 = vrot.slane %v713, %v729
        %v731 = vlaneseq
        %v732 = vshrl.u32 %v731, 7
        %v733 = vsub.s32 0, %v732
        %v734 = vrot.slane %v714, %v733
        %739 = vmatprep.subr.mxu0 0.0
        %740 = vmatpush1.msra.mxu0 %v695
        %741 = vmatprep.subr.mxu0 0.0
        %742 = vmatpush1.msra.mxu0 %v696
        %743 = vmatprep.subr.mxu0 0.0
        %744 = vmatpush1.msra.mxu0 %v697
        %745 = vmatprep.subr.mxu0 0.0
        %746 = vmatpush1.msra.mxu0 %v698
        %747 = vmatprep.subr.mxu0 0.0
        %748 = vmatpush1.msra.mxu0 0.0
        %749 = vmatprep.subr.mxu0 0.0
        %750 = vmatpush1.msra.mxu0 0.0
        %751 = vmatprep.subr.mxu0 0.0
        %752 = vmatpush1.msra.mxu0 0.0
        %753 = vmatprep.subr.mxu0 0.0
        %754 = vmatpush1.msra.mxu0 0.0
        %755 = vmatprep.subr.mxu0 0.0
        %756 = vmatpush1.msra.mxu0 0.0
        %757 = vmatprep.subr.mxu0 0.0
        %758 = vmatpush1.msra.mxu0 0.0
        %759 = vmatprep.subr.mxu0 0.0
        %760 = vmatpush1.msra.mxu0 0.0
        %761 = vmatprep.subr.mxu0 0.0
        %762 = vmatpush1.msra.mxu0 0.0
        %763 = vmatprep.subr.mxu0 0.0
        %764 = vmatpush1.msra.mxu0 0.0
        %765 = vmatprep.subr.mxu0 0.0
        %766 = vmatpush1.msra.mxu0 0.0
        %767 = vmatprep.subr.mxu0 0.0
        %768 = vmatpush1.msra.mxu0 0.0
        %769 = vmatprep.subr.mxu0 0.0
        %770 = vmatpush1.msra.mxu0 0.0
        %771 = vmatprep.subr.mxu0 0.0
        %772 = vmatpush1.msra.mxu0 0.0
        %773 = vmatprep.subr.mxu0 0.0
        %774 = vmatpush1.msra.mxu0 0.0
        %775 = vmatprep.subr.mxu0 0.0
        %776 = vmatpush1.msra.mxu0 0.0
        %777 = vmatprep.subr.mxu0 0.0
        %778 = vmatpush1.msra.mxu0 0.0
        %779 = vmatprep.subr.mxu0 0.0
        %780 = vmatpush1.msra.mxu0 0.0
        %781 = vmatprep.subr.mxu0 0.0
        %782 = vmatpush1.msra.mxu0 0.0
        %783 = vmatprep.subr.mxu0 0.0
        %784 = vmatpush1.msra.mxu0 0.0
        %785 = vmatprep.subr.mxu0 0.0
        %786 = vmatpush1.msra.mxu0 0.0
        %787 = vmatprep.subr.mxu0 0.0
        %788 = vmatpush1.msra.mxu0 0.0
        %789 = vmatprep.subr.mxu0 0.0
        %790 = vmatpush1.msra.mxu0 0.0
        %791 = vmatprep.subr.mxu0 0.0
        %792 = vmatpush1.msra.mxu0 0.0
        %793 = vmatprep.subr.mxu0 0.0
        %794 = vmatpush1.msra.mxu0 0.0
        %795 = vmatprep.subr.mxu0 0.0
        %796 = vmatpush1.msra.mxu0 0.0
        %797 = vmatprep.subr.mxu0 0.0
        %798 = vmatpush1.msra.mxu0 0.0
        %799 = vmatprep.subr.mxu0 0.0
        %800 = vmatpush1.msra.mxu0 0.0
        %801 = vmatprep.subr.mxu0 0.0
        %802 = vmatpush1.msra.mxu0 0.0
        %803 = vmatprep.mubr.f32.mxu0 0.0
        %804 = vmatmul.mubr.f32.gmra.mrb[0].mxu0 %v413
        %v805 = vpop.f32.mrb[0].mxu0
        %v806 = vadd.f32 %v722, %v805
        %v807 = vpop.f32.mrb[0].mxu0
        %808 = vdwg.mxu0
        %809 = vmatprep.subr.mxu0 0.0
        %810 = vmatpush1.msra.mxu0 %v699
        %811 = vmatprep.subr.mxu0 0.0
        %812 = vmatpush1.msra.mxu0 %v700
        %813 = vmatprep.subr.mxu0 0.0
        %814 = vmatpush1.msra.mxu0 %v701
        %815 = vmatprep.subr.mxu0 0.0
        %816 = vmatpush1.msra.mxu0 %v702
        %817 = vmatprep.subr.mxu0 0.0
        %818 = vmatpush1.msra.mxu0 0.0
        %819 = vmatprep.subr.mxu0 0.0
        %820 = vmatpush1.msra.mxu0 0.0
        %821 = vmatprep.subr.mxu0 0.0
        %822 = vmatpush1.msra.mxu0 0.0
        %823 = vmatprep.subr.mxu0 0.0
        %824 = vmatpush1.msra.mxu0 0.0
        %825 = vmatprep.subr.mxu0 0.0
        %826 = vmatpush1.msra.mxu0 0.0
        %827 = vmatprep.subr.mxu0 0.0
        %828 = vmatpush1.msra.mxu0 0.0
        %829 = vmatprep.subr.mxu0 0.0
        %830 = vmatpush1.msra.mxu0 0.0
        %831 = vmatprep.subr.mxu0 0.0
        %832 = vmatpush1.msra.mxu0 0.0
        %833 = vmatprep.subr.mxu0 0.0
        %834 = vmatpush1.msra.mxu0 0.0
        %835 = vmatprep.subr.mxu0 0.0
        %836 = vmatpush1.msra.mxu0 0.0
        %837 = vmatprep.subr.mxu0 0.0
        %838 = vmatpush1.msra.mxu0 0.0
        %839 = vmatprep.subr.mxu0 0.0
        %840 = vmatpush1.msra.mxu0 0.0
        %841 = vmatprep.subr.mxu0 0.0
        %842 = vmatpush1.msra.mxu0 0.0
        %843 = vmatprep.subr.mxu0 0.0
        %844 = vmatpush1.msra.mxu0 0.0
        %845 = vmatprep.subr.mxu0 0.0
        %846 = vmatpush1.msra.mxu0 0.0
        %847 = vmatprep.subr.mxu0 0.0
        %848 = vmatpush1.msra.mxu0 0.0
        %849 = vmatprep.subr.mxu0 0.0
        %850 = vmatpush1.msra.mxu0 0.0
        %851 = vmatprep.subr.mxu0 0.0
        %852 = vmatpush1.msra.mxu0 0.0
        %853 = vmatprep.subr.mxu0 0.0
        %854 = vmatpush1.msra.mxu0 0.0
        %855 = vmatprep.subr.mxu0 0.0
        %856 = vmatpush1.msra.mxu0 0.0
        %857 = vmatprep.subr.mxu0 0.0
        %858 = vmatpush1.msra.mxu0 0.0
        %859 = vmatprep.subr.mxu0 0.0
        %860 = vmatpush1.msra.mxu0 0.0
        %861 = vmatprep.subr.mxu0 0.0
        %862 = vmatpush1.msra.mxu0 0.0
        %863 = vmatprep.subr.mxu0 0.0
        %864 = vmatpush1.msra.mxu0 0.0
        %865 = vmatprep.subr.mxu0 0.0
        %866 = vmatpush1.msra.mxu0 0.0
        %867 = vmatprep.subr.mxu0 0.0
        %868 = vmatpush1.msra.mxu0 0.0
        %869 = vmatprep.subr.mxu0 0.0
        %870 = vmatpush1.msra.mxu0 0.0
        %871 = vmatprep.subr.mxu0 0.0
        %872 = vmatpush1.msra.mxu0 0.0
        %873 = vmatprep.mubr.f32.mxu0 0.0
        %874 = vmatmul.mubr.f32.gmra.mrb[0].mxu0 %v413
        %v875 = vpop.f32.mrb[0].mxu0
        %v876 = vadd.f32 %v726, %v875
        %v877 = vpop.f32.mrb[0].mxu0
        %878 = vdwg.mxu0
        %879 = vmatprep.subr.mxu0 0.0
        %880 = vmatpush1.msra.mxu0 %v703
        %881 = vmatprep.subr.mxu0 0.0
        %882 = vmatpush1.msra.mxu0 %v704
        %883 = vmatprep.subr.mxu0 0.0
        %884 = vmatpush1.msra.mxu0 %v705
        %885 = vmatprep.subr.mxu0 0.0
        %886 = vmatpush1.msra.mxu0 %v706
        %887 = vmatprep.subr.mxu0 0.0
        %888 = vmatpush1.msra.mxu0 0.0
        %889 = vmatprep.subr.mxu0 0.0
        %890 = vmatpush1.msra.mxu0 0.0
        %891 = vmatprep.subr.mxu0 0.0
        %892 = vmatpush1.msra.mxu0 0.0
        %893 = vmatprep.subr.mxu0 0.0
        %894 = vmatpush1.msra.mxu0 0.0
        %895 = vmatprep.subr.mxu0 0.0
        %896 = vmatpush1.msra.mxu0 0.0
        %897 = vmatprep.subr.mxu0 0.0
        %898 = vmatpush1.msra.mxu0 0.0
        %899 = vmatprep.subr.mxu0 0.0
        %900 = vmatpush1.msra.mxu0 0.0
        %901 = vmatprep.subr.mxu0 0.0
        %902 = vmatpush1.msra.mxu0 0.0
        %903 = vmatprep.subr.mxu0 0.0
        %904 = vmatpush1.msra.mxu0 0.0
        %905 = vmatprep.subr.mxu0 0.0
        %906 = vmatpush1.msra.mxu0 0.0
        %907 = vmatprep.subr.mxu0 0.0
        %908 = vmatpush1.msra.mxu0 0.0
        %909 = vmatprep.subr.mxu0 0.0
        %910 = vmatpush1.msra.mxu0 0.0
        %911 = vmatprep.subr.mxu0 0.0
        %912 = vmatpush1.msra.mxu0 0.0
        %913 = vmatprep.subr.mxu0 0.0
        %914 = vmatpush1.msra.mxu0 0.0
        %915 = vmatprep.subr.mxu0 0.0
        %916 = vmatpush1.msra.mxu0 0.0
        %917 = vmatprep.subr.mxu0 0.0
        %918 = vmatpush1.msra.mxu0 0.0
        %919 = vmatprep.subr.mxu0 0.0
        %920 = vmatpush1.msra.mxu0 0.0
        %921 = vmatprep.subr.mxu0 0.0
        %922 = vmatpush1.msra.mxu0 0.0
        %923 = vmatprep.subr.mxu0 0.0
        %924 = vmatpush1.msra.mxu0 0.0
        %925 = vmatprep.subr.mxu0 0.0
        %926 = vmatpush1.msra.mxu0 0.0
        %927 = vmatprep.subr.mxu0 0.0
        %928 = vmatpush1.msra.mxu0 0.0
        %929 = vmatprep.subr.mxu0 0.0
        %930 = vmatpush1.msra.mxu0 0.0
        %931 = vmatprep.subr.mxu0 0.0
        %932 = vmatpush1.msra.mxu0 0.0
        %933 = vmatprep.subr.mxu0 0.0
        %934 = vmatpush1.msra.mxu0 0.0
        %935 = vmatprep.subr.mxu0 0.0
        %936 = vmatpush1.msra.mxu0 0.0
        %937 = vmatprep.subr.mxu0 0.0
        %938 = vmatpush1.msra.mxu0 0.0
        %939 = vmatprep.subr.mxu0 0.0
        %940 = vmatpush1.msra.mxu0 0.0
        %941 = vmatprep.subr.mxu0 0.0
        %942 = vmatpush1.msra.mxu0 0.0
        %943 = vmatprep.mubr.f32.mxu0 0.0
        %944 = vmatmul.mubr.f32.gmra.mrb[0].mxu0 %v413
        %v945 = vpop.f32.mrb[0].mxu0
        %v946 = vadd.f32 %v730, %v945
        %v947 = vpop.f32.mrb[0].mxu0
        %948 = vdwg.mxu0
        %949 = vmatprep.subr.mxu0 0.0
        %950 = vmatpush1.msra.mxu0 %v707
        %951 = vmatprep.subr.mxu0 0.0
        %952 = vmatpush1.msra.mxu0 %v708
        %953 = vmatprep.subr.mxu0 0.0
        %954 = vmatpush1.msra.mxu0 %v709
        %955 = vmatprep.subr.mxu0 0.0
        %956 = vmatpush1.msra.mxu0 %v710
        %957 = vmatprep.subr.mxu0 0.0
        %958 = vmatpush1.msra.mxu0 0.0
        %959 = vmatprep.subr.mxu0 0.0
        %960 = vmatpush1.msra.mxu0 0.0
        %961 = vmatprep.subr.mxu0 0.0
        %962 = vmatpush1.msra.mxu0 0.0
        %963 = vmatprep.subr.mxu0 0.0
        %964 = vmatpush1.msra.mxu0 0.0
        %965 = vmatprep.subr.mxu0 0.0
        %966 = vmatpush1.msra.mxu0 0.0
        %967 = vmatprep.subr.mxu0 0.0
        %968 = vmatpush1.msra.mxu0 0.0
        %969 = vmatprep.subr.mxu0 0.0
        %970 = vmatpush1.msra.mxu0 0.0
        %971 = vmatprep.subr.mxu0 0.0
        %972 = vmatpush1.msra.mxu0 0.0
        %973 = vmatprep.subr.mxu0 0.0
        %974 = vmatpush1.msra.mxu0 0.0
        %975 = vmatprep.subr.mxu0 0.0
        %976 = vmatpush1.msra.mxu0 0.0
        %977 = vmatprep.subr.mxu0 0.0
        %978 = vmatpush1.msra.mxu0 0.0
        %979 = vmatprep.subr.mxu0 0.0
        %980 = vmatpush1.msra.mxu0 0.0
        %981 = vmatprep.subr.mxu0 0.0
        %982 = vmatpush1.msra.mxu0 0.0
        %983 = vmatprep.subr.mxu0 0.0
        %984 = vmatpush1.msra.mxu0 0.0
        %985 = vmatprep.subr.mxu0 0.0
        %986 = vmatpush1.msra.mxu0 0.0
        %987 = vmatprep.subr.mxu0 0.0
        %988 = vmatpush1.msra.mxu0 0.0
        %989 = vmatprep.subr.mxu0 0.0
        %990 = vmatpush1.msra.mxu0 0.0
        %991 = vmatprep.subr.mxu0 0.0
        %992 = vmatpush1.msra.mxu0 0.0
        %993 = vmatprep.subr.mxu0 0.0
        %994 = vmatpush1.msra.mxu0 0.0
        %995 = vmatprep.subr.mxu0 0.0
        %996 = vmatpush1.msra.mxu0 0.0
        %997 = vmatprep.subr.mxu0 0.0
        %998 = vmatpush1.msra.mxu0 0.0
        %999 = vmatprep.subr.mxu0 0.0
        %1000 = vmatpush1.msra.mxu0 0.0
        %1001 = vmatprep.subr.mxu0 0.0
        %1002 = vmatpush1.msra.mxu0 0.0
        %1003 = vmatprep.subr.mxu0 0.0
        %1004 = vmatpush1.msra.mxu0 0.0
        %1005 = vmatprep.subr.mxu0 0.0
        %1006 = vmatpush1.msra.mxu0 0.0
        %1007 = vmatprep.subr.mxu0 0.0
        %1008 = vmatpush1.msra.mxu0 0.0
        %1009 = vmatprep.subr.mxu0 0.0
        %1010 = vmatpush1.msra.mxu0 0.0
        %1011 = vmatprep.subr.mxu0 0.0
        %1012 = vmatpush1.msra.mxu0 0.0
        %1013 = vmatprep.mubr.f32.mxu0 0.0
        %1014 = vmatmul.mubr.f32.gmra.mrb[0].mxu0 %v413
        %v1015 = vpop.f32.mrb[0].mxu0
        %v1016 = vadd.f32 %v734, %v1015
        %v1017 = vpop.f32.mrb[0].mxu0
        %1018 = vdwg.mxu0
        %v1019 = vld [vmem:[%s3] sm:$0xff]
        %v1020 = vld [vmem:[%s3 + $0x8] sm:$0xff]
        %v1021 = vld [vmem:[%s3 + $0x10] sm:$0xff]
        %v1022 = vld [vmem:[%s3 + $0x18] sm:$0xff]
        %v1023 = vld [vmem:[%s3 + $0x20] sm:$0xff]
        %v1024 = vld [vmem:[%s3 + $0x28] sm:$0xff]
        %v1025 = vld [vmem:[%s3 + $0x30] sm:$0xff]
        %v1026 = vld [vmem:[%s3 + $0x38] sm:$0xff]
        %v1027 = vld [vmem:[%s3 + $0x40] sm:$0xff]
        %v1028 = vld [vmem:[%s3 + $0x48] sm:$0xff]
        %v1029 = vld [vmem:[%s3 + $0x50] sm:$0xff]
        %v1030 = vld [vmem:[%s3 + $0x58] sm:$0xff]
        %v1031 = vld [vmem:[%s3 + $0x60] sm:$0xff]
        %v1032 = vld [vmem:[%s3 + $0x68] sm:$0xff]
        %v1033 = vld [vmem:[%s3 + $0x70] sm:$0xff]
        %v1034 = vld [vmem:[%s3 + $0x78] sm:$0xff]
        %v1035 = vld [vmem:[%s6] sm:$0x1]
        %v1036 = vld [vmem:[%s6 + $0x1] sm:$0x1]
        %v1037 = vld [vmem:[%s6 + $0x2] sm:$0x1]
        %v1038 = vld [vmem:[%s6 + $0x3] sm:$0x1]
        %v1043 = vlaneseq
        %v1044 = vshrl.u32 %v1043, 7
        %v1045 = vsub.s32 0, %v1044
        %v1046 = vrot.slane %v1035, %v1045
        %v1047 = vlaneseq
        %v1048 = vshrl.u32 %v1047, 7
        %v1049 = vsub.s32 0, %v1048
        %v1050 = vrot.slane %v1036, %v1049
        %v1051 = vlaneseq
        %v1052 = vshrl.u32 %v1051, 7
        %v1053 = vsub.s32 0, %v1052
        %v1054 = vrot.slane %v1037, %v1053
        %v1055 = vlaneseq
        %v1056 = vshrl.u32 %v1055, 7
        %v1057 = vsub.s32 0, %v1056
        %v1058 = vrot.slane %v1038, %v1057
        %1063 = vmatprep.subr.mxu0 0.0
        %1064 = vmatpush1.msra.mxu0 %v1019
        %1065 = vmatprep.subr.mxu0 0.0
        %1066 = vmatpush1.msra.mxu0 %v1020
        %1067 = vmatprep.subr.mxu0 0.0
        %1068 = vmatpush1.msra.mxu0 %v1021
        %1069 = vmatprep.subr.mxu0 0.0
        %1070 = vmatpush1.msra.mxu0 %v1022
        %1071 = vmatprep.subr.mxu0 0.0
        %1072 = vmatpush1.msra.mxu0 0.0
        %1073 = vmatprep.subr.mxu0 0.0
        %1074 = vmatpush1.msra.mxu0 0.0
        %1075 = vmatprep.subr.mxu0 0.0
        %1076 = vmatpush1.msra.mxu0 0.0
        %1077 = vmatprep.subr.mxu0 0.0
        %1078 = vmatpush1.msra.mxu0 0.0
        %1079 = vmatprep.subr.mxu0 0.0
        %1080 = vmatpush1.msra.mxu0 0.0
        %1081 = vmatprep.subr.mxu0 0.0
        %1082 = vmatpush1.msra.mxu0 0.0
        %1083 = vmatprep.subr.mxu0 0.0
        %1084 = vmatpush1.msra.mxu0 0.0
        %1085 = vmatprep.subr.mxu0 0.0
        %1086 = vmatpush1.msra.mxu0 0.0
        %1087 = vmatprep.subr.mxu0 0.0
        %1088 = vmatpush1.msra.mxu0 0.0
        %1089 = vmatprep.subr.mxu0 0.0
        %1090 = vmatpush1.msra.mxu0 0.0
        %1091 = vmatprep.subr.mxu0 0.0
        %1092 = vmatpush1.msra.mxu0 0.0
        %1093 = vmatprep.subr.mxu0 0.0
        %1094 = vmatpush1.msra.mxu0 0.0
        %1095 = vmatprep.subr.mxu0 0.0
        %1096 = vmatpush1.msra.mxu0 0.0
        %1097 = vmatprep.subr.mxu0 0.0
        %1098 = vmatpush1.msra.mxu0 0.0
        %1099 = vmatprep.subr.mxu0 0.0
        %1100 = vmatpush1.msra.mxu0 0.0
        %1101 = vmatprep.subr.mxu0 0.0
        %1102 = vmatpush1.msra.mxu0 0.0
        %1103 = vmatprep.subr.mxu0 0.0
        %1104 = vmatpush1.msra.mxu0 0.0
        %1105 = vmatprep.subr.mxu0 0.0
        %1106 = vmatpush1.msra.mxu0 0.0
        %1107 = vmatprep.subr.mxu0 0.0
        %1108 = vmatpush1.msra.mxu0 0.0
        %1109 = vmatprep.subr.mxu0 0.0
        %1110 = vmatpush1.msra.mxu0 0.0
        %1111 = vmatprep.subr.mxu0 0.0
        %1112 = vmatpush1.msra.mxu0 0.0
        %1113 = vmatprep.subr.mxu0 0.0
        %1114 = vmatpush1.msra.mxu0 0.0
        %1115 = vmatprep.subr.mxu0 0.0
        %1116 = vmatpush1.msra.mxu0 0.0
        %1117 = vmatprep.subr.mxu0 0.0
        %1118 = vmatpush1.msra.mxu0 0.0
        %1119 = vmatprep.subr.mxu0 0.0
        %1120 = vmatpush1.msra.mxu0 0.0
        %1121 = vmatprep.subr.mxu0 0.0
        %1122 = vmatpush1.msra.mxu0 0.0
        %1123 = vmatprep.subr.mxu0 0.0
        %1124 = vmatpush1.msra.mxu0 0.0
        %1125 = vmatprep.subr.mxu0 0.0
        %1126 = vmatpush1.msra.mxu0 0.0
        %1127 = vmatprep.mubr.f32.mxu0 0.0
        %1128 = vmatmul.mubr.f32.gmra.mrb[0].mxu0 %v413
        %v1129 = vpop.f32.mrb[0].mxu0
        %v1130 = vadd.f32 %v1046, %v1129
        %v1131 = vpop.f32.mrb[0].mxu0
        %1132 = vdwg.mxu0
        %1133 = vmatprep.subr.mxu0 0.0
        %1134 = vmatpush1.msra.mxu0 %v1023
        %1135 = vmatprep.subr.mxu0 0.0
        %1136 = vmatpush1.msra.mxu0 %v1024
        %1137 = vmatprep.subr.mxu0 0.0
        %1138 = vmatpush1.msra.mxu0 %v1025
        %1139 = vmatprep.subr.mxu0 0.0
        %1140 = vmatpush1.msra.mxu0 %v1026
        %1141 = vmatprep.subr.mxu0 0.0
        %1142 = vmatpush1.msra.mxu0 0.0
        %1143 = vmatprep.subr.mxu0 0.0
        %1144 = vmatpush1.msra.mxu0 0.0
        %1145 = vmatprep.subr.mxu0 0.0
        %1146 = vmatpush1.msra.mxu0 0.0
        %1147 = vmatprep.subr.mxu0 0.0
        %1148 = vmatpush1.msra.mxu0 0.0
        %1149 = vmatprep.subr.mxu0 0.0
        %1150 = vmatpush1.msra.mxu0 0.0
        %1151 = vmatprep.subr.mxu0 0.0
        %1152 = vmatpush1.msra.mxu0 0.0
        %1153 = vmatprep.subr.mxu0 0.0
        %1154 = vmatpush1.msra.mxu0 0.0
        %1155 = vmatprep.subr.mxu0 0.0
        %1156 = vmatpush1.msra.mxu0 0.0
        %1157 = vmatprep.subr.mxu0 0.0
        %1158 = vmatpush1.msra.mxu0 0.0
        %1159 = vmatprep.subr.mxu0 0.0
        %1160 = vmatpush1.msra.mxu0 0.0
        %1161 = vmatprep.subr.mxu0 0.0
        %1162 = vmatpush1.msra.mxu0 0.0
        %1163 = vmatprep.subr.mxu0 0.0
        %1164 = vmatpush1.msra.mxu0 0.0
        %1165 = vmatprep.subr.mxu0 0.0
        %1166 = vmatpush1.msra.mxu0 0.0
        %1167 = vmatprep.subr.mxu0 0.0
        %1168 = vmatpush1.msra.mxu0 0.0
        %1169 = vmatprep.subr.mxu0 0.0
        %1170 = vmatpush1.msra.mxu0 0.0
        %1171 = vmatprep.subr.mxu0 0.0
        %1172 = vmatpush1.msra.mxu0 0.0
        %1173 = vmatprep.subr.mxu0 0.0
        %1174 = vmatpush1.msra.mxu0 0.0
        %1175 = vmatprep.subr.mxu0 0.0
        %1176 = vmatpush1.msra.mxu0 0.0
        %1177 = vmatprep.subr.mxu0 0.0
        %1178 = vmatpush1.msra.mxu0 0.0
        %1179 = vmatprep.subr.mxu0 0.0
        %1180 = vmatpush1.msra.mxu0 0.0
        %1181 = vmatprep.subr.mxu0 0.0
        %1182 = vmatpush1.msra.mxu0 0.0
        %1183 = vmatprep.subr.mxu0 0.0
        %1184 = vmatpush1.msra.mxu0 0.0
        %1185 = vmatprep.subr.mxu0 0.0
        %1186 = vmatpush1.msra.mxu0 0.0
        %1187 = vmatprep.subr.mxu0 0.0
        %1188 = vmatpush1.msra.mxu0 0.0
        %1189 = vmatprep.subr.mxu0 0.0
        %1190 = vmatpush1.msra.mxu0 0.0
        %1191 = vmatprep.subr.mxu0 0.0
        %1192 = vmatpush1.msra.mxu0 0.0
        %1193 = vmatprep.subr.mxu0 0.0
        %1194 = vmatpush1.msra.mxu0 0.0
        %1195 = vmatprep.subr.mxu0 0.0
        %1196 = vmatpush1.msra.mxu0 0.0
        %1197 = vmatprep.mubr.f32.mxu0 0.0
        %1198 = vmatmul.mubr.f32.gmra.mrb[0].mxu0 %v413
        %v1199 = vpop.f32.mrb[0].mxu0
        %v1200 = vadd.f32 %v1050, %v1199
        %v1201 = vpop.f32.mrb[0].mxu0
        %1202 = vdwg.mxu0
        %1203 = vmatprep.subr.mxu0 0.0
        %1204 = vmatpush1.msra.mxu0 %v1027
        %1205 = vmatprep.subr.mxu0 0.0
        %1206 = vmatpush1.msra.mxu0 %v1028
        %1207 = vmatprep.subr.mxu0 0.0
        %1208 = vmatpush1.msra.mxu0 %v1029
        %1209 = vmatprep.subr.mxu0 0.0
        %1210 = vmatpush1.msra.mxu0 %v1030
        %1211 = vmatprep.subr.mxu0 0.0
        %1212 = vmatpush1.msra.mxu0 0.0
        %1213 = vmatprep.subr.mxu0 0.0
        %1214 = vmatpush1.msra.mxu0 0.0
        %1215 = vmatprep.subr.mxu0 0.0
        %1216 = vmatpush1.msra.mxu0 0.0
        %1217 = vmatprep.subr.mxu0 0.0
        %1218 = vmatpush1.msra.mxu0 0.0
        %1219 = vmatprep.subr.mxu0 0.0
        %1220 = vmatpush1.msra.mxu0 0.0
        %1221 = vmatprep.subr.mxu0 0.0
        %1222 = vmatpush1.msra.mxu0 0.0
        %1223 = vmatprep.subr.mxu0 0.0
        %1224 = vmatpush1.msra.mxu0 0.0
        %1225 = vmatprep.subr.mxu0 0.0
        %1226 = vmatpush1.msra.mxu0 0.0
        %1227 = vmatprep.subr.mxu0 0.0
        %1228 = vmatpush1.msra.mxu0 0.0
        %1229 = vmatprep.subr.mxu0 0.0
        %1230 = vmatpush1.msra.mxu0 0.0
        %1231 = vmatprep.subr.mxu0 0.0
        %1232 = vmatpush1.msra.mxu0 0.0
        %1233 = vmatprep.subr.mxu0 0.0
        %1234 = vmatpush1.msra.mxu0 0.0
        %1235 = vmatprep.subr.mxu0 0.0
        %1236 = vmatpush1.msra.mxu0 0.0
        %1237 = vmatprep.subr.mxu0 0.0
        %1238 = vmatpush1.msra.mxu0 0.0
        %1239 = vmatprep.subr.mxu0 0.0
        %1240 = vmatpush1.msra.mxu0 0.0
        %1241 = vmatprep.subr.mxu0 0.0
        %1242 = vmatpush1.msra.mxu0 0.0
        %1243 = vmatprep.subr.mxu0 0.0
        %1244 = vmatpush1.msra.mxu0 0.0
        %1245 = vmatprep.subr.mxu0 0.0
        %1246 = vmatpush1.msra.mxu0 0.0
        %1247 = vmatprep.subr.mxu0 0.0
        %1248 = vmatpush1.msra.mxu0 0.0
        %1249 = vmatprep.subr.mxu0 0.0
        %1250 = vmatpush1.msra.mxu0 0.0
        %1251 = vmatprep.subr.mxu0 0.0
        %1252 = vmatpush1.msra.mxu0 0.0
        %1253 = vmatprep.subr.mxu0 0.0
        %1254 = vmatpush1.msra.mxu0 0.0
        %1255 = vmatprep.subr.mxu0 0.0
        %1256 = vmatpush1.msra.mxu0 0.0
        %1257 = vmatprep.subr.mxu0 0.0
        %1258 = vmatpush1.msra.mxu0 0.0
        %1259 = vmatprep.subr.mxu0 0.0
        %1260 = vmatpush1.msra.mxu0 0.0
        %1261 = vmatprep.subr.mxu0 0.0
        %1262 = vmatpush1.msra.mxu0 0.0
        %1263 = vmatprep.subr.mxu0 0.0
        %1264 = vmatpush1.msra.mxu0 0.0
        %1265 = vmatprep.subr.mxu0 0.0
        %1266 = vmatpush1.msra.mxu0 0.0
        %1267 = vmatprep.mubr.f32.mxu0 0.0
        %1268 = vmatmul.mubr.f32.gmra.mrb[0].mxu0 %v413
        %v1269 = vpop.f32.mrb[0].mxu0
        %v1270 = vadd.f32 %v1054, %v1269
        %v1271 = vpop.f32.mrb[0].mxu0
        %1272 = vdwg.mxu0
        %1273 = vmatprep.subr.mxu0 0.0
        %1274 = vmatpush1.msra.mxu0 %v1031
        %1275 = vmatprep.subr.mxu0 0.0
        %1276 = vmatpush1.msra.mxu0 %v1032
        %1277 = vmatprep.subr.mxu0 0.0
        %1278 = vmatpush1.msra.mxu0 %v1033
        %1279 = vmatprep.subr.mxu0 0.0
        %1280 = vmatpush1.msra.mxu0 %v1034
        %1281 = vmatprep.subr.mxu0 0.0
        %1282 = vmatpush1.msra.mxu0 0.0
        %1283 = vmatprep.subr.mxu0 0.0
        %1284 = vmatpush1.msra.mxu0 0.0
        %1285 = vmatprep.subr.mxu0 0.0
        %1286 = vmatpush1.msra.mxu0 0.0
        %1287 = vmatprep.subr.mxu0 0.0
        %1288 = vmatpush1.msra.mxu0 0.0
        %1289 = vmatprep.subr.mxu0 0.0
        %1290 = vmatpush1.msra.mxu0 0.0
        %1291 = vmatprep.subr.mxu0 0.0
        %1292 = vmatpush1.msra.mxu0 0.0
        %1293 = vmatprep.subr.mxu0 0.0
        %1294 = vmatpush1.msra.mxu0 0.0
        %1295 = vmatprep.subr.mxu0 0.0
        %1296 = vmatpush1.msra.mxu0 0.0
        %1297 = vmatprep.subr.mxu0 0.0
        %1298 = vmatpush1.msra.mxu0 0.0
        %1299 = vmatprep.subr.mxu0 0.0
        %1300 = vmatpush1.msra.mxu0 0.0
        %1301 = vmatprep.subr.mxu0 0.0
        %1302 = vmatpush1.msra.mxu0 0.0
        %1303 = vmatprep.subr.mxu0 0.0
        %1304 = vmatpush1.msra.mxu0 0.0
        %1305 = vmatprep.subr.mxu0 0.0
        %1306 = vmatpush1.msra.mxu0 0.0
        %1307 = vmatprep.subr.mxu0 0.0
        %1308 = vmatpush1.msra.mxu0 0.0
        %1309 = vmatprep.subr.mxu0 0.0
        %1310 = vmatpush1.msra.mxu0 0.0
        %1311 = vmatprep.subr.mxu0 0.0
        %1312 = vmatpush1.msra.mxu0 0.0
        %1313 = vmatprep.subr.mxu0 0.0
        %1314 = vmatpush1.msra.mxu0 0.0
        %1315 = vmatprep.subr.mxu0 0.0
        %1316 = vmatpush1.msra.mxu0 0.0
        %1317 = vmatprep.subr.mxu0 0.0
        %1318 = vmatpush1.msra.mxu0 0.0
        %1319 = vmatprep.subr.mxu0 0.0
        %1320 = vmatpush1.msra.mxu0 0.0
        %1321 = vmatprep.subr.mxu0 0.0
        %1322 = vmatpush1.msra.mxu0 0.0
        %1323 = vmatprep.subr.mxu0 0.0
        %1324 = vmatpush1.msra.mxu0 0.0
        %1325 = vmatprep.subr.mxu0 0.0
        %1326 = vmatpush1.msra.mxu0 0.0
        %1327 = vmatprep.subr.mxu0 0.0
        %1328 = vmatpush1.msra.mxu0 0.0
        %1329 = vmatprep.subr.mxu0 0.0
        %1330 = vmatpush1.msra.mxu0 0.0
        %1331 = vmatprep.subr.mxu0 0.0
        %1332 = vmatpush1.msra.mxu0 0.0
        %1333 = vmatprep.subr.mxu0 0.0
        %1334 = vmatpush1.msra.mxu0 0.0
        %1335 = vmatprep.subr.mxu0 0.0
        %1336 = vmatpush1.msra.mxu0 0.0
        %1337 = vmatprep.mubr.f32.mxu0 0.0
        %1338 = vmatmul.mubr.f32.gmra.mrb[0].mxu0 %v413
        %v1339 = vpop.f32.mrb[0].mxu0
        %v1340 = vadd.f32 %v1058, %v1339
        %v1341 = vpop.f32.mrb[0].mxu0
        %1342 = vdwg.mxu0
        %v1343 = vmul.f32 %v482, 0.35355338
        %v1344 = vmul.f32 %v552, 0.35355338
        %v1345 = vmul.f32 %v622, 0.35355338
        %v1346 = vmul.f32 %v692, 0.35355338
        %vm1347 = vcmask 64512
        %v1349 = vsel %vm1347, %v1343, 0
        %v1352 = vsel %vm1347, %v806, 0
        %1354 = vmatprep.subr.mxu0 0.0
        %1355 = vmatpush1.xpose.msra.mxu0 %v1352
        %1356 = vmatprep.subr.mxu0 0.0
        %1357 = vmatpush1.xpose.msra.mxu0 0.0
        %1358 = vmatprep.subr.mxu0 0.0
        %1359 = vmatpush1.xpose.msra.mxu0 0.0
        %1360 = vmatprep.subr.mxu0 0.0
        %1361 = vmatpush1.xpose.msra.mxu0 0.0
        %1362 = vmatprep.subr.mxu0 0.0
        %1363 = vmatpush1.xpose.msra.mxu0 0.0
        %1364 = vmatprep.subr.mxu0 0.0
        %1365 = vmatpush1.xpose.msra.mxu0 0.0
        %1366 = vmatprep.subr.mxu0 0.0
        %1367 = vmatpush1.xpose.msra.mxu0 0.0
        %1368 = vmatprep.subr.mxu0 0.0
        %1369 = vmatpush1.xpose.msra.mxu0 0.0
        %1370 = vmatprep.subr.mxu0 0.0
        %1371 = vmatpush1.xpose.msra.mxu0 0.0
        %1372 = vmatprep.subr.mxu0 0.0
        %1373 = vmatpush1.xpose.msra.mxu0 0.0
        %1374 = vmatprep.subr.mxu0 0.0
        %1375 = vmatpush1.xpose.msra.mxu0 0.0
        %1376 = vmatprep.subr.mxu0 0.0
        %1377 = vmatpush1.xpose.msra.mxu0 0.0
        %1378 = vmatprep.subr.mxu0 0.0
        %1379 = vmatpush1.xpose.msra.mxu0 0.0
        %1380 = vmatprep.subr.mxu0 0.0
        %1381 = vmatpush1.xpose.msra.mxu0 0.0
        %1382 = vmatprep.subr.mxu0 0.0
        %1383 = vmatpush1.xpose.msra.mxu0 0.0
        %1384 = vmatprep.subr.mxu0 0.0
        %1385 = vmatpush1.xpose.msra.mxu0 0.0
        %1386 = vmatprep.subr.mxu0 0.0
        %1387 = vmatpush1.xpose.msra.mxu0 0.0
        %1388 = vmatprep.subr.mxu0 0.0
        %1389 = vmatpush1.xpose.msra.mxu0 0.0
        %1390 = vmatprep.subr.mxu0 0.0
        %1391 = vmatpush1.xpose.msra.mxu0 0.0
        %1392 = vmatprep.subr.mxu0 0.0
        %1393 = vmatpush1.xpose.msra.mxu0 0.0
        %1394 = vmatprep.subr.mxu0 0.0
        %1395 = vmatpush1.xpose.msra.mxu0 0.0
        %1396 = vmatprep.subr.mxu0 0.0
        %1397 = vmatpush1.xpose.msra.mxu0 0.0
        %1398 = vmatprep.subr.mxu0 0.0
        %1399 = vmatpush1.xpose.msra.mxu0 0.0
        %1400 = vmatprep.subr.mxu0 0.0
        %1401 = vmatpush1.xpose.msra.mxu0 0.0
        %1402 = vmatprep.subr.mxu0 0.0
        %1403 = vmatpush1.xpose.msra.mxu0 0.0
        %1404 = vmatprep.subr.mxu0 0.0
        %1405 = vmatpush1.xpose.msra.mxu0 0.0
        %1406 = vmatprep.subr.mxu0 0.0
        %1407 = vmatpush1.xpose.msra.mxu0 0.0
        %1408 = vmatprep.subr.mxu0 0.0
        %1409 = vmatpush1.xpose.msra.mxu0 0.0
        %1410 = vmatprep.subr.mxu0 0.0
        %1411 = vmatpush1.xpose.msra.mxu0 0.0
        %1412 = vmatprep.subr.mxu0 0.0
        %1413 = vmatpush1.xpose.msra.mxu0 0.0
        %1414 = vmatprep.subr.mxu0 0.0
        %1415 = vmatpush1.xpose.msra.mxu0 0.0
        %1416 = vmatprep.subr.mxu0 0.0
        %1417 = vmatpush1.xpose.msra.mxu0 0.0
        %1418 = vmatprep.mubr.f32.mxu0 0.0
        %1419 = vmatmul.mubr.f32.gmra.mrb[0].mxu0 %v1349
        %v1420 = vpop.f32.mrb[0].mxu0
        %v1421 = vadd.f32 0.0, %v1420
        %v1422 = vpop.f32.mrb[0].mxu0
        %1423 = vdwg.mxu0
        %v1425 = vsel %vm1347, %v1344, 0
        %v1428 = vsel %vm1347, %v876, 0
        %1430 = vmatprep.subr.mxu0 0.0
        %1431 = vmatpush1.xpose.msra.mxu0 %v1428
        %1432 = vmatprep.subr.mxu0 0.0
        %1433 = vmatpush1.xpose.msra.mxu0 0.0
        %1434 = vmatprep.subr.mxu0 0.0
        %1435 = vmatpush1.xpose.msra.mxu0 0.0
        %1436 = vmatprep.subr.mxu0 0.0
        %1437 = vmatpush1.xpose.msra.mxu0 0.0
        %1438 = vmatprep.subr.mxu0 0.0
        %1439 = vmatpush1.xpose.msra.mxu0 0.0
        %1440 = vmatprep.subr.mxu0 0.0
        %1441 = vmatpush1.xpose.msra.mxu0 0.0
        %1442 = vmatprep.subr.mxu0 0.0
        %1443 = vmatpush1.xpose.msra.mxu0 0.0
        %1444 = vmatprep.subr.mxu0 0.0
        %1445 = vmatpush1.xpose.msra.mxu0 0.0
        %1446 = vmatprep.subr.mxu0 0.0
        %1447 = vmatpush1.xpose.msra.mxu0 0.0
        %1448 = vmatprep.subr.mxu0 0.0
        %1449 = vmatpush1.xpose.msra.mxu0 0.0
        %1450 = vmatprep.subr.mxu0 0.0
        %1451 = vmatpush1.xpose.msra.mxu0 0.0
        %1452 = vmatprep.subr.mxu0 0.0
        %1453 = vmatpush1.xpose.msra.mxu0 0.0
        %1454 = vmatprep.subr.mxu0 0.0
        %1455 = vmatpush1.xpose.msra.mxu0 0.0
        %1456 = vmatprep.subr.mxu0 0.0
        %1457 = vmatpush1.xpose.msra.mxu0 0.0
        %1458 = vmatprep.subr.mxu0 0.0
        %1459 = vmatpush1.xpose.msra.mxu0 0.0
        %1460 = vmatprep.subr.mxu0 0.0
        %1461 = vmatpush1.xpose.msra.mxu0 0.0
        %1462 = vmatprep.subr.mxu0 0.0
        %1463 = vmatpush1.xpose.msra.mxu0 0.0
        %1464 = vmatprep.subr.mxu0 0.0
        %1465 = vmatpush1.xpose.msra.mxu0 0.0
        %1466 = vmatprep.subr.mxu0 0.0
        %1467 = vmatpush1.xpose.msra.mxu0 0.0
        %1468 = vmatprep.subr.mxu0 0.0
        %1469 = vmatpush1.xpose.msra.mxu0 0.0
        %1470 = vmatprep.subr.mxu0 0.0
        %1471 = vmatpush1.xpose.msra.mxu0 0.0
        %1472 = vmatprep.subr.mxu0 0.0
        %1473 = vmatpush1.xpose.msra.mxu0 0.0
        %1474 = vmatprep.subr.mxu0 0.0
        %1475 = vmatpush1.xpose.msra.mxu0 0.0
        %1476 = vmatprep.subr.mxu0 0.0
        %1477 = vmatpush1.xpose.msra.mxu0 0.0
        %1478 = vmatprep.subr.mxu0 0.0
        %1479 = vmatpush1.xpose.msra.mxu0 0.0
        %1480 = vmatprep.subr.mxu0 0.0
        %1481 = vmatpush1.xpose.msra.mxu0 0.0
        %1482 = vmatprep.subr.mxu0 0.0
        %1483 = vmatpush1.xpose.msra.mxu0 0.0
        %1484 = vmatprep.subr.mxu0 0.0
        %1485 = vmatpush1.xpose.msra.mxu0 0.0
        %1486 = vmatprep.subr.mxu0 0.0
        %1487 = vmatpush1.xpose.msra.mxu0 0.0
        %1488 = vmatprep.subr.mxu0 0.0
        %1489 = vmatpush1.xpose.msra.mxu0 0.0
        %1490 = vmatprep.subr.mxu0 0.0
        %1491 = vmatpush1.xpose.msra.mxu0 0.0
        %1492 = vmatprep.subr.mxu0 0.0
        %1493 = vmatpush1.xpose.msra.mxu0 0.0
        %1494 = vmatprep.mubr.f32.mxu0 0.0
        %1495 = vmatmul.mubr.f32.gmra.mrb[0].mxu0 %v1425
        %v1496 = vpop.f32.mrb[0].mxu0
        %v1497 = vadd.f32 0.0, %v1496
        %v1498 = vpop.f32.mrb[0].mxu0
        %1499 = vdwg.mxu0
        %v1501 = vsel %vm1347, %v1345, 0
        %v1504 = vsel %vm1347, %v946, 0
        %1506 = vmatprep.subr.mxu0 0.0
        %1507 = vmatpush1.xpose.msra.mxu0 %v1504
        %1508 = vmatprep.subr.mxu0 0.0
        %1509 = vmatpush1.xpose.msra.mxu0 0.0
        %1510 = vmatprep.subr.mxu0 0.0
        %1511 = vmatpush1.xpose.msra.mxu0 0.0
        %1512 = vmatprep.subr.mxu0 0.0
        %1513 = vmatpush1.xpose.msra.mxu0 0.0
        %1514 = vmatprep.subr.mxu0 0.0
        %1515 = vmatpush1.xpose.msra.mxu0 0.0
        %1516 = vmatprep.subr.mxu0 0.0
        %1517 = vmatpush1.xpose.msra.mxu0 0.0
        %1518 = vmatprep.subr.mxu0 0.0
        %1519 = vmatpush1.xpose.msra.mxu0 0.0
        %1520 = vmatprep.subr.mxu0 0.0
        %1521 = vmatpush1.xpose.msra.mxu0 0.0
        %1522 = vmatprep.subr.mxu0 0.0
        %1523 = vmatpush1.xpose.msra.mxu0 0.0
        %1524 = vmatprep.subr.mxu0 0.0
        %1525 = vmatpush1.xpose.msra.mxu0 0.0
        %1526 = vmatprep.subr.mxu0 0.0
        %1527 = vmatpush1.xpose.msra.mxu0 0.0
        %1528 = vmatprep.subr.mxu0 0.0
        %1529 = vmatpush1.xpose.msra.mxu0 0.0
        %1530 = vmatprep.subr.mxu0 0.0
        %1531 = vmatpush1.xpose.msra.mxu0 0.0
        %1532 = vmatprep.subr.mxu0 0.0
        %1533 = vmatpush1.xpose.msra.mxu0 0.0
        %1534 = vmatprep.subr.mxu0 0.0
        %1535 = vmatpush1.xpose.msra.mxu0 0.0
        %1536 = vmatprep.subr.mxu0 0.0
        %1537 = vmatpush1.xpose.msra.mxu0 0.0
        %1538 = vmatprep.subr.mxu0 0.0
        %1539 = vmatpush1.xpose.msra.mxu0 0.0
        %1540 = vmatprep.subr.mxu0 0.0
        %1541 = vmatpush1.xpose.msra.mxu0 0.0
        %1542 = vmatprep.subr.mxu0 0.0
        %1543 = vmatpush1.xpose.msra.mxu0 0.0
        %1544 = vmatprep.subr.mxu0 0.0
        %1545 = vmatpush1.xpose.msra.mxu0 0.0
        %1546 = vmatprep.subr.mxu0 0.0
        %1547 = vmatpush1.xpose.msra.mxu0 0.0
        %1548 = vmatprep.subr.mxu0 0.0
        %1549 = vmatpush1.xpose.msra.mxu0 0.0
        %1550 = vmatprep.subr.mxu0 0.0
        %1551 = vmatpush1.xpose.msra.mxu0 0.0
        %1552 = vmatprep.subr.mxu0 0.0
        %1553 = vmatpush1.xpose.msra.mxu0 0.0
        %1554 = vmatprep.subr.mxu0 0.0
        %1555 = vmatpush1.xpose.msra.mxu0 0.0
        %1556 = vmatprep.subr.mxu0 0.0
        %1557 = vmatpush1.xpose.msra.mxu0 0.0
        %1558 = vmatprep.subr.mxu0 0.0
        %1559 = vmatpush1.xpose.msra.mxu0 0.0
        %1560 = vmatprep.subr.mxu0 0.0
        %1561 = vmatpush1.xpose.msra.mxu0 0.0
        %1562 = vmatprep.subr.mxu0 0.0
        %1563 = vmatpush1.xpose.msra.mxu0 0.0
        %1564 = vmatprep.subr.mxu0 0.0
        %1565 = vmatpush1.xpose.msra.mxu0 0.0
        %1566 = vmatprep.subr.mxu0 0.0
        %1567 = vmatpush1.xpose.msra.mxu0 0.0
        %1568 = vmatprep.subr.mxu0 0.0
        %1569 = vmatpush1.xpose.msra.mxu0 0.0
        %1570 = vmatprep.mubr.f32.mxu0 0.0
        %1571 = vmatmul.mubr.f32.gmra.mrb[0].mxu0 %v1501
        %v1572 = vpop.f32.mrb[0].mxu0
        %v1573 = vadd.f32 0.0, %v1572
        %v1574 = vpop.f32.mrb[0].mxu0
        %1575 = vdwg.mxu0
        %v1577 = vsel %vm1347, %v1346, 0
        %v1580 = vsel %vm1347, %v1016, 0
        %1582 = vmatprep.subr.mxu0 0.0
        %1583 = vmatpush1.xpose.msra.mxu0 %v1580
        %1584 = vmatprep.subr.mxu0 0.0
        %1585 = vmatpush1.xpose.msra.mxu0 0.0
        %1586 = vmatprep.subr.mxu0 0.0
        %1587 = vmatpush1.xpose.msra.mxu0 0.0
        %1588 = vmatprep.subr.mxu0 0.0
        %1589 = vmatpush1.xpose.msra.mxu0 0.0
        %1590 = vmatprep.subr.mxu0 0.0
        %1591 = vmatpush1.xpose.msra.mxu0 0.0
        %1592 = vmatprep.subr.mxu0 0.0
        %1593 = vmatpush1.xpose.msra.mxu0 0.0
        %1594 = vmatprep.subr.mxu0 0.0
        %1595 = vmatpush1.xpose.msra.mxu0 0.0
        %1596 = vmatprep.subr.mxu0 0.0
        %1597 = vmatpush1.xpose.msra.mxu0 0.0
        %1598 = vmatprep.subr.mxu0 0.0
        %1599 = vmatpush1.xpose.msra.mxu0 0.0
        %1600 = vmatprep.subr.mxu0 0.0
        %1601 = vmatpush1.xpose.msra.mxu0 0.0
        %1602 = vmatprep.subr.mxu0 0.0
        %1603 = vmatpush1.xpose.msra.mxu0 0.0
        %1604 = vmatprep.subr.mxu0 0.0
        %1605 = vmatpush1.xpose.msra.mxu0 0.0
        %1606 = vmatprep.subr.mxu0 0.0
        %1607 = vmatpush1.xpose.msra.mxu0 0.0
        %1608 = vmatprep.subr.mxu0 0.0
        %1609 = vmatpush1.xpose.msra.mxu0 0.0
        %1610 = vmatprep.subr.mxu0 0.0
        %1611 = vmatpush1.xpose.msra.mxu0 0.0
        %1612 = vmatprep.subr.mxu0 0.0
        %1613 = vmatpush1.xpose.msra.mxu0 0.0
        %1614 = vmatprep.subr.mxu0 0.0
        %1615 = vmatpush1.xpose.msra.mxu0 0.0
        %1616 = vmatprep.subr.mxu0 0.0
        %1617 = vmatpush1.xpose.msra.mxu0 0.0
        %1618 = vmatprep.subr.mxu0 0.0
        %1619 = vmatpush1.xpose.msra.mxu0 0.0
        %1620 = vmatprep.subr.mxu0 0.0
        %1621 = vmatpush1.xpose.msra.mxu0 0.0
        %1622 = vmatprep.subr.mxu0 0.0
        %1623 = vmatpush1.xpose.msra.mxu0 0.0
        %1624 = vmatprep.subr.mxu0 0.0
        %1625 = vmatpush1.xpose.msra.mxu0 0.0
        %1626 = vmatprep.subr.mxu0 0.0
        %1627 = vmatpush1.xpose.msra.mxu0 0.0
        %1628 = vmatprep.subr.mxu0 0.0
        %1629 = vmatpush1.xpose.msra.mxu0 0.0
        %1630 = vmatprep.subr.mxu0 0.0
        %1631 = vmatpush1.xpose.msra.mxu0 0.0
        %1632 = vmatprep.subr.mxu0 0.0
        %1633 = vmatpush1.xpose.msra.mxu0 0.0
        %1634 = vmatprep.subr.mxu0 0.0
        %1635 = vmatpush1.xpose.msra.mxu0 0.0
        %1636 = vmatprep.subr.mxu0 0.0
        %1637 = vmatpush1.xpose.msra.mxu0 0.0
        %1638 = vmatprep.subr.mxu0 0.0
        %1639 = vmatpush1.xpose.msra.mxu0 0.0
        %1640 = vmatprep.subr.mxu0 0.0
        %1641 = vmatpush1.xpose.msra.mxu0 0.0
        %1642 = vmatprep.subr.mxu0 0.0
        %1643 = vmatpush1.xpose.msra.mxu0 0.0
        %1644 = vmatprep.subr.mxu0 0.0
        %1645 = vmatpush1.xpose.msra.mxu0 0.0
        %1646 = vmatprep.mubr.f32.mxu0 0.0
        %1647 = vmatmul.mubr.f32.gmra.mrb[0].mxu0 %v1577
        %v1648 = vpop.f32.mrb[0].mxu0
        %v1649 = vadd.f32 0.0, %v1648
        %v1650 = vpop.f32.mrb[0].mxu0
        %1651 = vdwg.mxu0
        %v1652 = vsel %vm1347, %v1421, -inf
        %1653 = vmax.xlane.f32.xlu0 %v1652
        %v1654 = vpop.xlane.xlu0 %1653
        %v1655 = vsel %vm1347, %v1497, -inf
        %1656 = vmax.xlane.f32.xlu0 %v1655
        %v1657 = vpop.xlane.xlu0 %1656
        %v1658 = vsel %vm1347, %v1573, -inf
        %1659 = vmax.xlane.f32.xlu0 %v1658
        %v1660 = vpop.xlane.xlu0 %1659
        %v1661 = vsel %vm1347, %v1649, -inf
        %1662 = vmax.xlane.f32.xlu0 %v1661
        %v1663 = vpop.xlane.xlu0 %1662
        %v1664 = vsub.f32 %v1421, %v1654
        %v1665 = vsub.f32 %v1497, %v1657
        %v1666 = vsub.f32 %v1573, %v1660
        %v1667 = vsub.f32 %v1649, %v1663
        %v1668 = vmul.f32 %v1664, 1.442695
        %v1669 = vpow.pop %v1668
        %v1670 = vmul.f32 %v1665, 1.442695
        %v1671 = vpow.pop %v1670
        %v1672 = vmul.f32 %v1666, 1.442695
        %v1673 = vpow.pop %v1672
        %v1674 = vmul.f32 %v1667, 1.442695
        %v1675 = vpow.pop %v1674
        %v1676 = vsel %vm1347, %v1669, 0.0
        %1677 = vadd.xlane.f32.xlu0 %v1676
        %v1678 = vpop.xlane.xlu0 %1677
        %v1679 = vsel %vm1347, %v1671, 0.0
        %1680 = vadd.xlane.f32.xlu0 %v1679
        %v1681 = vpop.xlane.xlu0 %1680
        %v1682 = vsel %vm1347, %v1673, 0.0
        %1683 = vadd.xlane.f32.xlu0 %v1682
        %v1684 = vpop.xlane.xlu0 %1683
        %v1685 = vsel %vm1347, %v1675, 0.0
        %1686 = vadd.xlane.f32.xlu0 %v1685
        %v1687 = vpop.xlane.xlu0 %1686
        %v1688 = vrcp.pop %v1678
        %v1689 = vrcp.pop %v1681
        %v1690 = vrcp.pop %v1684
        %v1691 = vrcp.pop %v1687
        %v1692 = vmul.f32 %v1669, %v1688
        %v1693 = vmul.f32 %v1671, %v1689
        %v1694 = vmul.f32 %v1673, %v1690
        %v1695 = vmul.f32 %v1675, %v1691
        %v1697 = vsel %vm1347, %v1692, 0
        %1699 = vmatprep.subr.mxu0 0.0
        %1700 = vmatpush1.msra.mxu0 %v1130
        %1701 = vmatprep.subr.mxu0 0.0
        %1702 = vmatpush1.msra.mxu0 0.0
        %1703 = vmatprep.subr.mxu0 0.0
        %1704 = vmatpush1.msra.mxu0 0.0
        %1705 = vmatprep.subr.mxu0 0.0
        %1706 = vmatpush1.msra.mxu0 0.0
        %1707 = vmatprep.subr.mxu0 0.0
        %1708 = vmatpush1.msra.mxu0 0.0
        %1709 = vmatprep.subr.mxu0 0.0
        %1710 = vmatpush1.msra.mxu0 0.0
        %1711 = vmatprep.subr.mxu0 0.0
        %1712 = vmatpush1.msra.mxu0 0.0
        %1713 = vmatprep.subr.mxu0 0.0
        %1714 = vmatpush1.msra.mxu0 0.0
        %1715 = vmatprep.subr.mxu0 0.0
        %1716 = vmatpush1.msra.mxu0 0.0
        %1717 = vmatprep.subr.mxu0 0.0
        %1718 = vmatpush1.msra.mxu0 0.0
        %1719 = vmatprep.subr.mxu0 0.0
        %1720 = vmatpush1.msra.mxu0 0.0
        %1721 = vmatprep.subr.mxu0 0.0
        %1722 = vmatpush1.msra.mxu0 0.0
        %1723 = vmatprep.subr.mxu0 0.0
        %1724 = vmatpush1.msra.mxu0 0.0
        %1725 = vmatprep.subr.mxu0 0.0
        %1726 = vmatpush1.msra.mxu0 0.0
        %1727 = vmatprep.subr.mxu0 0.0
        %1728 = vmatpush1.msra.mxu0 0.0
        %1729 = vmatprep.subr.mxu0 0.0
        %1730 = vmatpush1.msra.mxu0 0.0
        %1731 = vmatprep.subr.mxu0 0.0
        %1732 = vmatpush1.msra.mxu0 0.0
        %1733 = vmatprep.subr.mxu0 0.0
        %1734 = vmatpush1.msra.mxu0 0.0
        %1735 = vmatprep.subr.mxu0 0.0
        %1736 = vmatpush1.msra.mxu0 0.0
        %1737 = vmatprep.subr.mxu0 0.0
        %1738 = vmatpush1.msra.mxu0 0.0
        %1739 = vmatprep.subr.mxu0 0.0
        %1740 = vmatpush1.msra.mxu0 0.0
        %1741 = vmatprep.subr.mxu0 0.0
        %1742 = vmatpush1.msra.mxu0 0.0
        %1743 = vmatprep.subr.mxu0 0.0
        %1744 = vmatpush1.msra.mxu0 0.0
        %1745 = vmatprep.subr.mxu0 0.0
        %1746 = vmatpush1.msra.mxu0 0.0
        %1747 = vmatprep.subr.mxu0 0.0
        %1748 = vmatpush1.msra.mxu0 0.0
        %1749 = vmatprep.subr.mxu0 0.0
        %1750 = vmatpush1.msra.mxu0 0.0
        %1751 = vmatprep.subr.mxu0 0.0
        %1752 = vmatpush1.msra.mxu0 0.0
        %1753 = vmatprep.subr.mxu0 0.0
        %1754 = vmatpush1.msra.mxu0 0.0
        %1755 = vmatprep.subr.mxu0 0.0
        %1756 = vmatpush1.msra.mxu0 0.0
        %1757 = vmatprep.subr.mxu0 0.0
        %1758 = vmatpush1.msra.mxu0 0.0
        %1759 = vmatprep.subr.mxu0 0.0
        %1760 = vmatpush1.msra.mxu0 0.0
        %1761 = vmatprep.subr.mxu0 0.0
        %1762 = vmatpush1.msra.mxu0 0.0
        %1763 = vmatprep.mubr.f32.mxu0 0.0
        %1764 = vmatmul.mubr.f32.gmra.mrb[0].mxu0 %v1697
        %v1765 = vpop.f32.mrb[0].mxu0
        %v1766 = vadd.f32 0.0, %v1765
        %v1767 = vpop.f32.mrb[0].mxu0
        %1768 = vdwg.mxu0
        %v1770 = vsel %vm1347, %v1693, 0
        %1772 = vmatprep.subr.mxu0 0.0
        %1773 = vmatpush1.msra.mxu0 %v1200
        %1774 = vmatprep.subr.mxu0 0.0
        %1775 = vmatpush1.msra.mxu0 0.0
        %1776 = vmatprep.subr.mxu0 0.0
        %1777 = vmatpush1.msra.mxu0 0.0
        %1778 = vmatprep.subr.mxu0 0.0
        %1779 = vmatpush1.msra.mxu0 0.0
        %1780 = vmatprep.subr.mxu0 0.0
        %1781 = vmatpush1.msra.mxu0 0.0
        %1782 = vmatprep.subr.mxu0 0.0
        %1783 = vmatpush1.msra.mxu0 0.0
        %1784 = vmatprep.subr.mxu0 0.0
        %1785 = vmatpush1.msra.mxu0 0.0
        %1786 = vmatprep.subr.mxu0 0.0
        %1787 = vmatpush1.msra.mxu0 0.0
        %1788 = vmatprep.subr.mxu0 0.0
        %1789 = vmatpush1.msra.mxu0 0.0
        %1790 = vmatprep.subr.mxu0 0.0
        %1791 = vmatpush1.msra.mxu0 0.0
        %1792 = vmatprep.subr.mxu0 0.0
        %1793 = vmatpush1.msra.mxu0 0.0
        %1794 = vmatprep.subr.mxu0 0.0
        %1795 = vmatpush1.msra.mxu0 0.0
        %1796 = vmatprep.subr.mxu0 0.0
        %1797 = vmatpush1.msra.mxu0 0.0
        %1798 = vmatprep.subr.mxu0 0.0
        %1799 = vmatpush1.msra.mxu0 0.0
        %1800 = vmatprep.subr.mxu0 0.0
        %1801 = vmatpush1.msra.mxu0 0.0
        %1802 = vmatprep.subr.mxu0 0.0
        %1803 = vmatpush1.msra.mxu0 0.0
        %1804 = vmatprep.subr.mxu0 0.0
        %1805 = vmatpush1.msra.mxu0 0.0
        %1806 = vmatprep.subr.mxu0 0.0
        %1807 = vmatpush1.msra.mxu0 0.0
        %1808 = vmatprep.subr.mxu0 0.0
        %1809 = vmatpush1.msra.mxu0 0.0
        %1810 = vmatprep.subr.mxu0 0.0
        %1811 = vmatpush1.msra.mxu0 0.0
        %1812 = vmatprep.subr.mxu0 0.0
        %1813 = vmatpush1.msra.mxu0 0.0
        %1814 = vmatprep.subr.mxu0 0.0
        %1815 = vmatpush1.msra.mxu0 0.0
        %1816 = vmatprep.subr.mxu0 0.0
        %1817 = vmatpush1.msra.mxu0 0.0
        %1818 = vmatprep.subr.mxu0 0.0
        %1819 = vmatpush1.msra.mxu0 0.0
        %1820 = vmatprep.subr.mxu0 0.0
        %1821 = vmatpush1.msra.mxu0 0.0
        %1822 = vmatprep.subr.mxu0 0.0
        %1823 = vmatpush1.msra.mxu0 0.0
        %1824 = vmatprep.subr.mxu0 0.0
        %1825 = vmatpush1.msra.mxu0 0.0
        %1826 = vmatprep.subr.mxu0 0.0
        %1827 = vmatpush1.msra.mxu0 0.0
        %1828 = vmatprep.subr.mxu0 0.0
        %1829 = vmatpush1.msra.mxu0 0.0
        %1830 = vmatprep.subr.mxu0 0.0
        %1831 = vmatpush1.msra.mxu0 0.0
        %1832 = vmatprep.subr.mxu0 0.0
        %1833 = vmatpush1.msra.mxu0 0.0
        %1834 = vmatprep.subr.mxu0 0.0
        %1835 = vmatpush1.msra.mxu0 0.0
        %1836 = vmatprep.mubr.f32.mxu0 0.0
        %1837 = vmatmul.mubr.f32.gmra.mrb[0].mxu0 %v1770
        %v1838 = vpop.f32.mrb[0].mxu0
        %v1839 = vadd.f32 0.0, %v1838
        %v1840 = vpop.f32.mrb[0].mxu0
        %1841 = vdwg.mxu0
        %v1843 = vsel %vm1347, %v1694, 0
        %1845 = vmatprep.subr.mxu0 0.0
        %1846 = vmatpush1.msra.mxu0 %v1270
        %1847 = vmatprep.subr.mxu0 0.0
        %1848 = vmatpush1.msra.mxu0 0.0
        %1849 = vmatprep.subr.mxu0 0.0
        %1850 = vmatpush1.msra.mxu0 0.0
        %1851 = vmatprep.subr.mxu0 0.0
        %1852 = vmatpush1.msra.mxu0 0.0
        %1853 = vmatprep.subr.mxu0 0.0
        %1854 = vmatpush1.msra.mxu0 0.0
        %1855 = vmatprep.subr.mxu0 0.0
        %1856 = vmatpush1.msra.mxu0 0.0
        %1857 = vmatprep.subr.mxu0 0.0
        %1858 = vmatpush1.msra.mxu0 0.0
        %1859 = vmatprep.subr.mxu0 0.0
        %1860 = vmatpush1.msra.mxu0 0.0
        %1861 = vmatprep.subr.mxu0 0.0
        %1862 = vmatpush1.msra.mxu0 0.0
        %1863 = vmatprep.subr.mxu0 0.0
        %1864 = vmatpush1.msra.mxu0 0.0
        %1865 = vmatprep.subr.mxu0 0.0
        %1866 = vmatpush1.msra.mxu0 0.0
        %1867 = vmatprep.subr.mxu0 0.0
        %1868 = vmatpush1.msra.mxu0 0.0
        %1869 = vmatprep.subr.mxu0 0.0
        %1870 = vmatpush1.msra.mxu0 0.0
        %1871 = vmatprep.subr.mxu0 0.0
        %1872 = vmatpush1.msra.mxu0 0.0
        %1873 = vmatprep.subr.mxu0 0.0
        %1874 = vmatpush1.msra.mxu0 0.0
        %1875 = vmatprep.subr.mxu0 0.0
        %1876 = vmatpush1.msra.mxu0 0.0
        %1877 = vmatprep.subr.mxu0 0.0
        %1878 = vmatpush1.msra.mxu0 0.0
        %1879 = vmatprep.subr.mxu0 0.0
        %1880 = vmatpush1.msra.mxu0 0.0
        %1881 = vmatprep.subr.mxu0 0.0
        %1882 = vmatpush1.msra.mxu0 0.0
        %1883 = vmatprep.subr.mxu0 0.0
        %1884 = vmatpush1.msra.mxu0 0.0
        %1885 = vmatprep.subr.mxu0 0.0
        %1886 = vmatpush1.msra.mxu0 0.0
        %1887 = vmatprep.subr.mxu0 0.0
        %1888 = vmatpush1.msra.mxu0 0.0
        %1889 = vmatprep.subr.mxu0 0.0
        %1890 = vmatpush1.msra.mxu0 0.0
        %1891 = vmatprep.subr.mxu0 0.0
        %1892 = vmatpush1.msra.mxu0 0.0
        %1893 = vmatprep.subr.mxu0 0.0
        %1894 = vmatpush1.msra.mxu0 0.0
        %1895 = vmatprep.subr.mxu0 0.0
        %1896 = vmatpush1.msra.mxu0 0.0
        %1897 = vmatprep.subr.mxu0 0.0
        %1898 = vmatpush1.msra.mxu0 0.0
        %1899 = vmatprep.subr.mxu0 0.0
        %1900 = vmatpush1.msra.mxu0 0.0
        %1901 = vmatprep.subr.mxu0 0.0
        %1902 = vmatpush1.msra.mxu0 0.0
        %1903 = vmatprep.subr.mxu0 0.0
        %1904 = vmatpush1.msra.mxu0 0.0
        %1905 = vmatprep.subr.mxu0 0.0
        %1906 = vmatpush1.msra.mxu0 0.0
        %1907 = vmatprep.subr.mxu0 0.0
        %1908 = vmatpush1.msra.mxu0 0.0
        %1909 = vmatprep.mubr.f32.mxu0 0.0
        %1910 = vmatmul.mubr.f32.gmra.mrb[0].mxu0 %v1843
        %v1911 = vpop.f32.mrb[0].mxu0
        %v1912 = vadd.f32 0.0, %v1911
        %v1913 = vpop.f32.mrb[0].mxu0
        %1914 = vdwg.mxu0
        %v1916 = vsel %vm1347, %v1695, 0
        %1918 = vmatprep.subr.mxu0 0.0
        %1919 = vmatpush1.msra.mxu0 %v1340
        %1920 = vmatprep.subr.mxu0 0.0
        %1921 = vmatpush1.msra.mxu0 0.0
        %1922 = vmatprep.subr.mxu0 0.0
        %1923 = vmatpush1.msra.mxu0 0.0
        %1924 = vmatprep.subr.mxu0 0.0
        %1925 = vmatpush1.msra.mxu0 0.0
        %1926 = vmatprep.subr.mxu0 0.0
        %1927 = vmatpush1.msra.mxu0 0.0
        %1928 = vmatprep.subr.mxu0 0.0
        %1929 = vmatpush1.msra.mxu0 0.0
        %1930 = vmatprep.subr.mxu0 0.0
        %1931 = vmatpush1.msra.mxu0 0.0
        %1932 = vmatprep.subr.mxu0 0.0
        %1933 = vmatpush1.msra.mxu0 0.0
        %1934 = vmatprep.subr.mxu0 0.0
        %1935 = vmatpush1.msra.mxu0 0.0
        %1936 = vmatprep.subr.mxu0 0.0
        %1937 = vmatpush1.msra.mxu0 0.0
        %1938 = vmatprep.subr.mxu0 0.0
        %1939 = vmatpush1.msra.mxu0 0.0
        %1940 = vmatprep.subr.mxu0 0.0
        %1941 = vmatpush1.msra.mxu0 0.0
        %1942 = vmatprep.subr.mxu0 0.0
        %1943 = vmatpush1.msra.mxu0 0.0
        %1944 = vmatprep.subr.mxu0 0.0
        %1945 = vmatpush1.msra.mxu0 0.0
        %1946 = vmatprep.subr.mxu0 0.0
        %1947 = vmatpush1.msra.mxu0 0.0
        %1948 = vmatprep.subr.mxu0 0.0
        %1949 = vmatpush1.msra.mxu0 0.0
        %1950 = vmatprep.subr.mxu0 0.0
        %1951 = vmatpush1.msra.mxu0 0.0
        %1952 = vmatprep.subr.mxu0 0.0
        %1953 = vmatpush1.msra.mxu0 0.0
        %1954 = vmatprep.subr.mxu0 0.0
        %1955 = vmatpush1.msra.mxu0 0.0
        %1956 = vmatprep.subr.mxu0 0.0
        %1957 = vmatpush1.msra.mxu0 0.0
        %1958 = vmatprep.subr.mxu0 0.0
        %1959 = vmatpush1.msra.mxu0 0.0
        %1960 = vmatprep.subr.mxu0 0.0
        %1961 = vmatpush1.msra.mxu0 0.0
        %1962 = vmatprep.subr.mxu0 0.0
        %1963 = vmatpush1.msra.mxu0 0.0
        %1964 = vmatprep.subr.mxu0 0.0
        %1965 = vmatpush1.msra.mxu0 0.0
        %1966 = vmatprep.subr.mxu0 0.0
        %1967 = vmatpush1.msra.mxu0 0.0
        %1968 = vmatprep.subr.mxu0 0.0
        %1969 = vmatpush1.msra.mxu0 0.0
        %1970 = vmatprep.subr.mxu0 0.0
        %1971 = vmatpush1.msra.mxu0 0.0
        %1972 = vmatprep.subr.mxu0 0.0
        %1973 = vmatpush1.msra.mxu0 0.0
        %1974 = vmatprep.subr.mxu0 0.0
        %1975 = vmatpush1.msra.mxu0 0.0
        %1976 = vmatprep.subr.mxu0 0.0
        %1977 = vmatpush1.msra.mxu0 0.0
        %1978 = vmatprep.subr.mxu0 0.0
        %1979 = vmatpush1.msra.mxu0 0.0
        %1980 = vmatprep.subr.mxu0 0.0
        %1981 = vmatpush1.msra.mxu0 0.0
        %1982 = vmatprep.mubr.f32.mxu0 0.0
        %1983 = vmatmul.mubr.f32.gmra.mrb[0].mxu0 %v1916
        %v1984 = vpop.f32.mrb[0].mxu0
        %v1985 = vadd.f32 0.0, %v1984
        %v1986 = vpop.f32.mrb[0].mxu0
        %1987 = vdwg.mxu0
        %v1988 = vld [vmem:[%s7] sm:$0xff]
        %v1989 = vld [vmem:[%s7 + $0x8] sm:$0xff]
        %v1990 = vld [vmem:[%s7 + $0x10] sm:$0xff]
        %v1991 = vld [vmem:[%s7 + $0x18] sm:$0xff]
        %v1993 = vsel %vm1347, %v1766, 0
        %1995 = vmatprep.subr.mxu0 0.0
        %1996 = vmatpush1.msra.mxu0 %v1988
        %1997 = vmatprep.subr.mxu0 0.0
        %1998 = vmatpush1.msra.mxu0 0.0
        %1999 = vmatprep.subr.mxu0 0.0
        %2000 = vmatpush1.msra.mxu0 0.0
        %2001 = vmatprep.subr.mxu0 0.0
        %2002 = vmatpush1.msra.mxu0 0.0
        %2003 = vmatprep.subr.mxu0 0.0
        %2004 = vmatpush1.msra.mxu0 0.0
        %2005 = vmatprep.subr.mxu0 0.0
        %2006 = vmatpush1.msra.mxu0 0.0
        %2007 = vmatprep.subr.mxu0 0.0
        %2008 = vmatpush1.msra.mxu0 0.0
        %2009 = vmatprep.subr.mxu0 0.0
        %2010 = vmatpush1.msra.mxu0 0.0
        %2011 = vmatprep.subr.mxu0 0.0
        %2012 = vmatpush1.msra.mxu0 0.0
        %2013 = vmatprep.subr.mxu0 0.0
        %2014 = vmatpush1.msra.mxu0 0.0
        %2015 = vmatprep.subr.mxu0 0.0
        %2016 = vmatpush1.msra.mxu0 0.0
        %2017 = vmatprep.subr.mxu0 0.0
        %2018 = vmatpush1.msra.mxu0 0.0
        %2019 = vmatprep.subr.mxu0 0.0
        %2020 = vmatpush1.msra.mxu0 0.0
        %2021 = vmatprep.subr.mxu0 0.0
        %2022 = vmatpush1.msra.mxu0 0.0
        %2023 = vmatprep.subr.mxu0 0.0
        %2024 = vmatpush1.msra.mxu0 0.0
        %2025 = vmatprep.subr.mxu0 0.0
        %2026 = vmatpush1.msra.mxu0 0.0
        %2027 = vmatprep.subr.mxu0 0.0
        %2028 = vmatpush1.msra.mxu0 0.0
        %2029 = vmatprep.subr.mxu0 0.0
        %2030 = vmatpush1.msra.mxu0 0.0
        %2031 = vmatprep.subr.mxu0 0.0
        %2032 = vmatpush1.msra.mxu0 0.0
        %2033 = vmatprep.subr.mxu0 0.0
        %2034 = vmatpush1.msra.mxu0 0.0
        %2035 = vmatprep.subr.mxu0 0.0
        %2036 = vmatpush1.msra.mxu0 0.0
        %2037 = vmatprep.subr.mxu0 0.0
        %2038 = vmatpush1.msra.mxu0 0.0
        %2039 = vmatprep.subr.mxu0 0.0
        %2040 = vmatpush1.msra.mxu0 0.0
        %2041 = vmatprep.subr.mxu0 0.0
        %2042 = vmatpush1.msra.mxu0 0.0
        %2043 = vmatprep.subr.mxu0 0.0
        %2044 = vmatpush1.msra.mxu0 0.0
        %2045 = vmatprep.subr.mxu0 0.0
        %2046 = vmatpush1.msra.mxu0 0.0
        %2047 = vmatprep.subr.mxu0 0.0
        %2048 = vmatpush1.msra.mxu0 0.0
        %2049 = vmatprep.subr.mxu0 0.0
        %2050 = vmatpush1.msra.mxu0 0.0
        %2051 = vmatprep.subr.mxu0 0.0
        %2052 = vmatpush1.msra.mxu0 0.0
        %2053 = vmatprep.subr.mxu0 0.0
        %2054 = vmatpush1.msra.mxu0 0.0
        %2055 = vmatprep.subr.mxu0 0.0
        %2056 = vmatpush1.msra.mxu0 0.0
        %2057 = vmatprep.subr.mxu0 0.0
        %2058 = vmatpush1.msra.mxu0 0.0
        %2059 = vmatprep.mubr.f32.mxu0 0.0
        %2060 = vmatmul.mubr.f32.gmra.mrb[0].mxu0 %v1993
        %v2061 = vpop.f32.mrb[0].mxu0
        %v2062 = vadd.f32 0.0, %v2061
        %v2063 = vpop.f32.mrb[0].mxu0
        %2064 = vdwg.mxu0
        %v2066 = vsel %vm1347, %v1839, 0
        %2068 = vmatprep.subr.mxu0 0.0
        %2069 = vmatpush1.msra.mxu0 %v1989
        %2070 = vmatprep.subr.mxu0 0.0
        %2071 = vmatpush1.msra.mxu0 0.0
        %2072 = vmatprep.subr.mxu0 0.0
        %2073 = vmatpush1.msra.mxu0 0.0
        %2074 = vmatprep.subr.mxu0 0.0
        %2075 = vmatpush1.msra.mxu0 0.0
        %2076 = vmatprep.subr.mxu0 0.0
        %2077 = vmatpush1.msra.mxu0 0.0
        %2078 = vmatprep.subr.mxu0 0.0
        %2079 = vmatpush1.msra.mxu0 0.0
        %2080 = vmatprep.subr.mxu0 0.0
        %2081 = vmatpush1.msra.mxu0 0.0
        %2082 = vmatprep.subr.mxu0 0.0
        %2083 = vmatpush1.msra.mxu0 0.0
        %2084 = vmatprep.subr.mxu0 0.0
        %2085 = vmatpush1.msra.mxu0 0.0
        %2086 = vmatprep.subr.mxu0 0.0
        %2087 = vmatpush1.msra.mxu0 0.0
        %2088 = vmatprep.subr.mxu0 0.0
        %2089 = vmatpush1.msra.mxu0 0.0
        %2090 = vmatprep.subr.mxu0 0.0
        %2091 = vmatpush1.msra.mxu0 0.0
        %2092 = vmatprep.subr.mxu0 0.0
        %2093 = vmatpush1.msra.mxu0 0.0
        %2094 = vmatprep.subr.mxu0 0.0
        %2095 = vmatpush1.msra.mxu0 0.0
        %2096 = vmatprep.subr.mxu0 0.0
        %2097 = vmatpush1.msra.mxu0 0.0
        %2098 = vmatprep.subr.mxu0 0.0
        %2099 = vmatpush1.msra.mxu0 0.0
        %2100 = vmatprep.subr.mxu0 0.0
        %2101 = vmatpush1.msra.mxu0 0.0
        %2102 = vmatprep.subr.mxu0 0.0
        %2103 = vmatpush1.msra.mxu0 0.0
        %2104 = vmatprep.subr.mxu0 0.0
        %2105 = vmatpush1.msra.mxu0 0.0
        %2106 = vmatprep.subr.mxu0 0.0
        %2107 = vmatpush1.msra.mxu0 0.0
        %2108 = vmatprep.subr.mxu0 0.0
        %2109 = vmatpush1.msra.mxu0 0.0
        %2110 = vmatprep.subr.mxu0 0.0
        %2111 = vmatpush1.msra.mxu0 0.0
        %2112 = vmatprep.subr.mxu0 0.0
        %2113 = vmatpush1.msra.mxu0 0.0
        %2114 = vmatprep.subr.mxu0 0.0
        %2115 = vmatpush1.msra.mxu0 0.0
        %2116 = vmatprep.subr.mxu0 0.0
        %2117 = vmatpush1.msra.mxu0 0.0
        %2118 = vmatprep.subr.mxu0 0.0
        %2119 = vmatpush1.msra.mxu0 0.0
        %2120 = vmatprep.subr.mxu0 0.0
        %2121 = vmatpush1.msra.mxu0 0.0
        %2122 = vmatprep.subr.mxu0 0.0
        %2123 = vmatpush1.msra.mxu0 0.0
        %2124 = vmatprep.subr.mxu0 0.0
        %2125 = vmatpush1.msra.mxu0 0.0
        %2126 = vmatprep.subr.mxu0 0.0
        %2127 = vmatpush1.msra.mxu0 0.0
        %2128 = vmatprep.subr.mxu0 0.0
        %2129 = vmatpush1.msra.mxu0 0.0
        %2130 = vmatprep.subr.mxu0 0.0
        %2131 = vmatpush1.msra.mxu0 0.0
        %2132 = vmatprep.mubr.f32.mxu0 0.0
        %2133 = vmatmul.mubr.f32.gmra.mrb[0].mxu0 %v2066
        %v2134 = vpop.f32.mrb[0].mxu0
        %v2135 = vadd.f32 0.0, %v2134
        %v2136 = vpop.f32.mrb[0].mxu0
        %2137 = vdwg.mxu0
        %v2139 = vsel %vm1347, %v1912, 0
        %2141 = vmatprep.subr.mxu0 0.0
        %2142 = vmatpush1.msra.mxu0 %v1990
        %2143 = vmatprep.subr.mxu0 0.0
        %2144 = vmatpush1.msra.mxu0 0.0
        %2145 = vmatprep.subr.mxu0 0.0
        %2146 = vmatpush1.msra.mxu0 0.0
        %2147 = vmatprep.subr.mxu0 0.0
        %2148 = vmatpush1.msra.mxu0 0.0
        %2149 = vmatprep.subr.mxu0 0.0
        %2150 = vmatpush1.msra.mxu0 0.0
        %2151 = vmatprep.subr.mxu0 0.0
        %2152 = vmatpush1.msra.mxu0 0.0
        %2153 = vmatprep.subr.mxu0 0.0
        %2154 = vmatpush1.msra.mxu0 0.0
        %2155 = vmatprep.subr.mxu0 0.0
        %2156 = vmatpush1.msra.mxu0 0.0
        %2157 = vmatprep.subr.mxu0 0.0
        %2158 = vmatpush1.msra.mxu0 0.0
        %2159 = vmatprep.subr.mxu0 0.0
        %2160 = vmatpush1.msra.mxu0 0.0
        %2161 = vmatprep.subr.mxu0 0.0
        %2162 = vmatpush1.msra.mxu0 0.0
        %2163 = vmatprep.subr.mxu0 0.0
        %2164 = vmatpush1.msra.mxu0 0.0
        %2165 = vmatprep.subr.mxu0 0.0
        %2166 = vmatpush1.msra.mxu0 0.0
        %2167 = vmatprep.subr.mxu0 0.0
        %2168 = vmatpush1.msra.mxu0 0.0
        %2169 = vmatprep.subr.mxu0 0.0
        %2170 = vmatpush1.msra.mxu0 0.0
        %2171 = vmatprep.subr.mxu0 0.0
        %2172 = vmatpush1.msra.mxu0 0.0
        %2173 = vmatprep.subr.mxu0 0.0
        %2174 = vmatpush1.msra.mxu0 0.0
        %2175 = vmatprep.subr.mxu0 0.0
        %2176 = vmatpush1.msra.mxu0 0.0
        %2177 = vmatprep.subr.mxu0 0.0
        %2178 = vmatpush1.msra.mxu0 0.0
        %2179 = vmatprep.subr.mxu0 0.0
        %2180 = vmatpush1.msra.mxu0 0.0
        %2181 = vmatprep.subr.mxu0 0.0
        %2182 = vmatpush1.msra.mxu0 0.0
        %2183 = vmatprep.subr.mxu0 0.0
        %2184 = vmatpush1.msra.mxu0 0.0
        %2185 = vmatprep.subr.mxu0 0.0
        %2186 = vmatpush1.msra.mxu0 0.0
        %2187 = vmatprep.subr.mxu0 0.0
        %2188 = vmatpush1.msra.mxu0 0.0
        %2189 = vmatprep.subr.mxu0 0.0
        %2190 = vmatpush1.msra.mxu0 0.0
        %2191 = vmatprep.subr.mxu0 0.0
        %2192 = vmatpush1.msra.mxu0 0.0
        %2193 = vmatprep.subr.mxu0 0.0
        %2194 = vmatpush1.msra.mxu0 0.0
        %2195 = vmatprep.subr.mxu0 0.0
        %2196 = vmatpush1.msra.mxu0 0.0
        %2197 = vmatprep.subr.mxu0 0.0
        %2198 = vmatpush1.msra.mxu0 0.0
        %2199 = vmatprep.subr.mxu0 0.0
        %2200 = vmatpush1.msra.mxu0 0.0
        %2201 = vmatprep.subr.mxu0 0.0
        %2202 = vmatpush1.msra.mxu0 0.0
        %2203 = vmatprep.subr.mxu0 0.0
        %2204 = vmatpush1.msra.mxu0 0.0
        %2205 = vmatprep.mubr.f32.mxu0 0.0
        %2206 = vmatmul.mubr.f32.gmra.mrb[0].mxu0 %v2139
        %v2207 = vpop.f32.mrb[0].mxu0
        %v2208 = vadd.f32 0.0, %v2207
        %v2209 = vpop.f32.mrb[0].mxu0
        %2210 = vdwg.mxu0
        %v2212 = vsel %vm1347, %v1985, 0
        %2214 = vmatprep.subr.mxu0 0.0
        %2215 = vmatpush1.msra.mxu0 %v1991
        %2216 = vmatprep.subr.mxu0 0.0
        %2217 = vmatpush1.msra.mxu0 0.0
        %2218 = vmatprep.subr.mxu0 0.0
        %2219 = vmatpush1.msra.mxu0 0.0
        %2220 = vmatprep.subr.mxu0 0.0
        %2221 = vmatpush1.msra.mxu0 0.0
        %2222 = vmatprep.subr.mxu0 0.0
        %2223 = vmatpush1.msra.mxu0 0.0
        %2224 = vmatprep.subr.mxu0 0.0
        %2225 = vmatpush1.msra.mxu0 0.0
        %2226 = vmatprep.subr.mxu0 0.0
        %2227 = vmatpush1.msra.mxu0 0.0
        %2228 = vmatprep.subr.mxu0 0.0
        %2229 = vmatpush1.msra.mxu0 0.0
        %2230 = vmatprep.subr.mxu0 0.0
        %2231 = vmatpush1.msra.mxu0 0.0
        %2232 = vmatprep.subr.mxu0 0.0
        %2233 = vmatpush1.msra.mxu0 0.0
        %2234 = vmatprep.subr.mxu0 0.0
        %2235 = vmatpush1.msra.mxu0 0.0
        %2236 = vmatprep.subr.mxu0 0.0
        %2237 = vmatpush1.msra.mxu0 0.0
        %2238 = vmatprep.subr.mxu0 0.0
        %2239 = vmatpush1.msra.mxu0 0.0
        %2240 = vmatprep.subr.mxu0 0.0
        %2241 = vmatpush1.msra.mxu0 0.0
        %2242 = vmatprep.subr.mxu0 0.0
        %2243 = vmatpush1.msra.mxu0 0.0
        %2244 = vmatprep.subr.mxu0 0.0
        %2245 = vmatpush1.msra.mxu0 0.0
        %2246 = vmatprep.subr.mxu0 0.0
        %2247 = vmatpush1.msra.mxu0 0.0
        %2248 = vmatprep.subr.mxu0 0.0
        %2249 = vmatpush1.msra.mxu0 0.0
        %2250 = vmatprep.subr.mxu0 0.0
        %2251 = vmatpush1.msra.mxu0 0.0
        %2252 = vmatprep.subr.mxu0 0.0
        %2253 = vmatpush1.msra.mxu0 0.0
        %2254 = vmatprep.subr.mxu0 0.0
        %2255 = vmatpush1.msra.mxu0 0.0
        %2256 = vmatprep.subr.mxu0 0.0
        %2257 = vmatpush1.msra.mxu0 0.0
        %2258 = vmatprep.subr.mxu0 0.0
        %2259 = vmatpush1.msra.mxu0 0.0
        %2260 = vmatprep.subr.mxu0 0.0
        %2261 = vmatpush1.msra.mxu0 0.0
        %2262 = vmatprep.subr.mxu0 0.0
        %2263 = vmatpush1.msra.mxu0 0.0
        %2264 = vmatprep.subr.mxu0 0.0
        %2265 = vmatpush1.msra.mxu0 0.0
        %2266 = vmatprep.subr.mxu0 0.0
        %2267 = vmatpush1.msra.mxu0 0.0
        %2268 = vmatprep.subr.mxu0 0.0
        %2269 = vmatpush1.msra.mxu0 0.0
        %2270 = vmatprep.subr.mxu0 0.0
        %2271 = vmatpush1.msra.mxu0 0.0
        %2272 = vmatprep.subr.mxu0 0.0
        %2273 = vmatpush1.msra.mxu0 0.0
        %2274 = vmatprep.subr.mxu0 0.0
        %2275 = vmatpush1.msra.mxu0 0.0
        %2276 = vmatprep.subr.mxu0 0.0
        %2277 = vmatpush1.msra.mxu0 0.0
        %2278 = vmatprep.mubr.f32.mxu0 0.0
        %2279 = vmatmul.mubr.f32.gmra.mrb[0].mxu0 %v2212
        %v2280 = vpop.f32.mrb[0].mxu0
        %v2281 = vadd.f32 0.0, %v2280
        %v2282 = vpop.f32.mrb[0].mxu0
        %2283 = vdwg.mxu0
        %v2284 = vsel %vm411, %v2062, 0.0
        %v2285 = vsel %vm411, %v2135, 0.0
        %v2286 = vadd.f32 %v2284, %v2285
        %v2287 = vsel %vm411, %v2208, 0.0
        %v2288 = vadd.f32 %v2286, %v2287
        %v2289 = vsel %vm411, %v2281, 0.0
        %v2290 = vadd.f32 %v2288, %v2289
        %v2291 = vld [vmem:[%s8] sm:$0x1]
        %v2293 = vlaneseq
        %v2294 = vshrl.u32 %v2293, 7
        %v2295 = vsub.s32 0, %v2294
        %v2296 = vrot.slane %v2291, %v2295
        %v2298 = vadd.f32 %v2290, %v2296
        %2299 = vst.msk [vmem:[%s354] sm:$0xff] %vm411, %v2298
        %v2300 = vsel %vm1347, %v1692, 0.0
        %v2301 = vsel %vm1347, %v1693, 0.0
        %v2302 = vadd.f32 %v2300, %v2301
        %v2303 = vsel %vm1347, %v1694, 0.0
        %v2304 = vadd.f32 %v2302, %v2303
        %v2305 = vsel %vm1347, %v1695, 0.0
        %v2306 = vadd.f32 %v2304, %v2305
        %v2307 = vmul.f32 %v2306, 0.25
        %2308 = vst.msk [vmem:[%s361] sm:$0xff] %vm1347, %v2307
        %s2309 = sand.u32 %s230, 1
        %s2310 = scalar_lea.sflag [#allocation3], %s2309
        %s2311 = sand.u32 %s230, 1
        %s2312 = smul.addr %s2311, 8
        %s2313 = scalar_lea.vmem [#allocation2], %s2312
        %s2314 = sand.u32 %s256, 1
        %s2315 = scalar_lea.sflag [#allocation5], %s2314
        %s2316 = sand.u32 %s256, 1
        %s2317 = smul.addr %s2316, 8
        %s2318 = scalar_lea.vmem [#allocation4], %s2317
        // Predicated region
        $region57: #{tpu_custom_call.1} parent=55 // pred_check
          %p2319 = pneg %p240
        $region58: #{tpu_custom_call.1} parent=55 // pred_check_branch
          %2321 = sbr.rel (%p2319) target = $region60
        $region59: #{tpu_custom_call.1} parent=55 // pred_region
          %s2323 = ssub.s32 128, 128
          %2324 = vsyncadd %s2310, %s2323
          %s2325 = smul.addr %s28, 128
          %s2326 = scalar_lea.hbm %s9, %s2325
          %s2328 = sshll.u32 %s2313, 4
          %s2329 = int_to_ptr.vmem [resolvable:$true] %s2328
          %2331 = dma.vmem_to_hbm [thread:$0]  %s2329, 128, %s2326, %s2310
        $region60: #{tpu_custom_call.1} parent=55 // pred_fallthru
          _
        // Predicated region
        $region61: #{tpu_custom_call.1} parent=55 // pred_check
          %p2332 = pneg %p266
        $region62: #{tpu_custom_call.1} parent=55 // pred_check_branch
          %2334 = sbr.rel (%p2332) target = $region64
        $region63: #{tpu_custom_call.1} parent=55 // pred_region
          %s2336 = ssub.s32 128, 128
          %2337 = vsyncadd %s2315, %s2336
          %s2338 = smul.addr %s28, 128
          %s2339 = scalar_lea.hbm %s10, %s2338
          %s2341 = sshll.u32 %s2318, 4
          %s2342 = int_to_ptr.vmem [resolvable:$true] %s2341
          %2344 = dma.vmem_to_hbm [thread:$0]  %s2342, 128, %s2339, %s2315
        $region64: #{tpu_custom_call.1} parent=55 // pred_fallthru
          _
      $region56: #{tpu_custom_call.1} parent=5 // pred_fallthru
        _
      %p2345 = scmp.le.s32.totalorder 2, %s23
      // Predicated region
      $region65: #{tpu_custom_call.1} parent=5 // pred_check
        %p2346 = pneg %p2345
      $region66: #{tpu_custom_call.1} parent=5 // pred_check_branch
        %2348 = sbr.rel (%p2346) target = $region68
      $region67: #{tpu_custom_call.1} parent=5 // pred_region
        %s2349 = ssub.s32 %s23, 2
        // Predicated region
        $region69: #{tpu_custom_call.1} parent=67 // pred_check
          %p2350 = pneg %p246
        $region70: #{tpu_custom_call.1} parent=67 // pred_check_branch
          %2352 = sbr.rel (%p2350) target = $region72
        $region71: #{tpu_custom_call.1} parent=67 // pred_region
          %s2353 = sand.u32 %s231, 1
          %s2354 = scalar_lea.sflag [#allocation3], %s2353
          %s2355 = sand.u32 %s231, 1
          %s2356 = smul.addr %s2355, 8
          %s2357 = scalar_lea.vmem [#allocation2], %s2356
          %2358 = dma.done %s2354, 128
        $region72: #{tpu_custom_call.1} parent=67 // pred_fallthru
          _
        // Predicated region
        $region73: #{tpu_custom_call.1} parent=67 // pred_check
          %p2359 = pneg %p272
        $region74: #{tpu_custom_call.1} parent=67 // pred_check_branch
          %2361 = sbr.rel (%p2359) target = $region76
        $region75: #{tpu_custom_call.1} parent=67 // pred_region
          %s2362 = sand.u32 %s257, 1
          %s2363 = scalar_lea.sflag [#allocation5], %s2362
          %s2364 = sand.u32 %s257, 1
          %s2365 = smul.addr %s2364, 8
          %s2366 = scalar_lea.vmem [#allocation4], %s2365
          %2367 = dma.done %s2363, 128
        $region76: #{tpu_custom_call.1} parent=67 // pred_fallthru
          _
      $region68: #{tpu_custom_call.1} parent=5 // pred_fallthru
        _
    $region6: #{tpu_custom_call.1} parent=1 // loop_footer
      %s27 = sadd.s32 1, %s23
    $region7: #{tpu_custom_call.1} parent=1 // loop_footer_branch
      %22 = sbr.rel target = $region3
    $region8: #{tpu_custom_call.1} parent=1 // loop_exit
      _
    %2368 = vsyncpa [#allocation3], 1
    %s2369 = scalar_lea.sflag [#allocation3], 1
    %2370 = vsyncpa %s2369, 1
    %2371 = vsyncpa [#allocation5], 1
    %s2372 = scalar_lea.sflag [#allocation5], 1
    %2373 = vsyncpa %s2372, 1

</llo_original>
